<compile_context>
chip_gen: v7x
topology: tpu7x:2x2x1
jax: 0.10.0
libtpu: 0.0.40
codegen_flags: <defaults>
</compile_context>

<pallas_src>
import functools

import jax
import jax.numpy as jnp
from jax import lax
from jax.experimental import pallas as pl
from jax.experimental.pallas import tpu as pltpu


# ----------------------------------------------------------------------------
# Generation-aware tuning
# ----------------------------------------------------------------------------

def _tpu_generation():
    try:
        kind = jax.devices()[0].device_kind.lower()
    except Exception:
        return "unknown"
    if "v7" in kind:
        return "v7x"
    if "v6" in kind:
        return "v6e"
    if "v5e" in kind or "v5 lite" in kind or "v5lite" in kind:
        return "v5e"
    return "unknown"


_TUNING = {
    #            points/tile   explicit scoped-VMEM   bf16 VPU   2 TC/chip
    "v7x":     dict(tn=2048, vmem=48 << 20, bf16_epilogue=True,  two_cores=True),
    "v6e":     dict(tn=2048, vmem=64 << 20, bf16_epilogue=True,  two_cores=False),
    "v5e":     dict(tn=1024, vmem=32 << 20, bf16_epilogue=False, two_cores=False),
    "unknown": dict(tn=1024, vmem=32 << 20, bf16_epilogue=False, two_cores=False),
}


# ----------------------------------------------------------------------------
# Kernel
# ----------------------------------------------------------------------------

def _pointnet_kernel(x_ref,
                     w1_ref, t1_ref,
                     w2_ref, t2_ref,
                     w3_ref, t3_ref,
                     w4_ref, t4_ref,
                     ori_ref, max_ref,
                     *, n_points, tn, tiles_per_split, mask_from_tile,
                     bf16_epilogue):
    """One grid step = one (batch element, points-split, N-tile)."""
    s = pl.program_id(1)                      # megacore points-split index
    n = pl.program_id(2)                      # N-tile index within the split
    g = s * tiles_per_split + n               # global (unclamped) tile index

    x = x_ref[0].astype(jnp.bfloat16)         # (C_in, TN)

    def layer(h_bf16, w_ref, t_ref):
        acc = jnp.dot(w_ref[...], h_bf16, preferred_element_type=jnp.float32)
        if bf16_epilogue:
            # bf16 VPU (v6e/v7x): add + ReLU touch half as many vregs.
            return jnp.maximum(
                acc.astype(jnp.bfloat16) + t_ref[...].astype(jnp.bfloat16), 0)
        # v5e: keep the epilogue in f32 (no bf16 VPU path), cast once for MXU.
        return jnp.maximum(acc + t_ref[...], 0.0).astype(jnp.bfloat16)

    h = layer(x, w1_ref, t1_ref)              # (64,  TN)
    h = layer(h, w2_ref, t2_ref)              # (128, TN)
    h = layer(h, w3_ref, t3_ref)              # (256, TN)

    # Layer 4 stays f32: it feeds the x_ori store and the max.
    h = jnp.dot(w4_ref[...], h, preferred_element_type=jnp.float32)
    h = h + t4_ref[...]                       # (C_out, TN) f32

    ori_ref[0] = h.astype(ori_ref.dtype)

    # Running max over the points axis (VMEM-resident accumulator per (b, s)).
    def accumulate(tile_max):
        @pl.when(n == 0)
        def _():
            max_ref[0, 0] = tile_max

        @pl.when(n != 0)
        def _():
            max_ref[0, 0] = jnp.maximum(max_ref[0, 0], tile_max)

    if mask_from_tile is None:
        # N divides evenly into tiles/splits: no masking anywhere.
        accumulate(jnp.max(h, axis=1, keepdims=True))
    else:
        # Only the ragged last tile (and clamped duplicate tiles of the
        # megacore split) pay for the mask; full tiles take the cheap path.
        @pl.when(g < mask_from_tile)
        def _():
            accumulate(jnp.max(h, axis=1, keepdims=True))

        @pl.when(g >= mask_from_tile)
        def _():
            # Select (not additive -inf) so NaN/Inf garbage from OOB input
            # columns can never reach the max.
            col = g * tn + lax.broadcasted_iota(jnp.int32, (1, tn), 1)
            hm = jnp.where(col < n_points, h, -jnp.inf)
            accumulate(jnp.max(hm, axis=1, keepdims=True))


# ----------------------------------------------------------------------------
# Wrapper
# ----------------------------------------------------------------------------

def pointnet_feat_forward(x_ncw, params, *, tn=None, ori_dtype=jnp.float32,
                          config=None):
    """PointNetfeat.forward.

    x_ncw : (B, C_in, N) float32, PyTorch NCW layout (used as-is, no transpose).
    params: dict with scale-folded bf16 weights w{i} (C_out_i, C_in_i) and f32
            shifts t{i} (C_out_i, 1).
    Returns (x_max, x_ori) matching PyTorch: x_max (B, C_out), x_ori (B, C_out, N).
    """
    B, C_in, N = x_ncw.shape
    C_out = params["w4"].shape[0]

    cfg = dict(_TUNING[_tpu_generation()])
    if config:
        cfg.update(config)

    # ---- points tile size -------------------------------------------------
    if tn is None:
        tn = cfg["tn"]
    tn = min(tn, N)
    if tn < N:
        tn = (tn // 128) * 128 or 128          # lane-aligned unless tn == N
    n_tiles = pl.cdiv(N, tn)

    # ---- megacore split of the points axis (v7x, odd B) --------------------
    # With only the batch axis parallel, B==1 strands one of v7x's two
    # TensorCores; split the tile axis into S parallel halves instead.
    S = 2 if (cfg["two_cores"] and (B % 2 == 1) and n_tiles >= 2) else 1
    tps = pl.cdiv(n_tiles, S)                  # tiles per split
    total_tiles = S * tps                      # may exceed n_tiles (duplicates)

    # ---- masking policy (trace-time) ---------------------------------------
    ragged = (N % tn) != 0
    if ragged:
        mask_from_tile = n_tiles - 1           # ragged last tile + duplicates
    elif total_tiles > n_tiles:
        mask_from_tile = n_tiles               # only clamped duplicate tiles
    else:
        mask_from_tile = None                  # no masking code emitted

    # ---- index maps ---------------------------------------------------------
    if total_tiles > n_tiles:
        # Duplicate tiles (beyond the last valid one) are clamped so they
        # recompute and rewrite the last valid tile (idempotent) and their max
        # contribution is fully masked to -inf above.
        def _nblk(s, n):
            return jnp.minimum(s * tps + n, n_tiles - 1)
    else:
        def _nblk(s, n):
            return s * tps + n

    x_index = lambda b, s, n: (b, 0, _nblk(s, n))
    ori_index = lambda b, s, n: (b, 0, _nblk(s, n))
    max_index = lambda b, s, n: (b, s, 0, 0)
    const = lambda b, s, n: (0, 0)

    kernel = functools.partial(
        _pointnet_kernel,
        n_points=N, tn=tn, tiles_per_split=tps,
        mask_from_tile=mask_from_tile,
        bf16_epilogue=cfg["bf16_epilogue"])

    out_ori, out_max = pl.pallas_call(
        kernel,
        out_shape=(
            jax.ShapeDtypeStruct((B, C_out, N), ori_dtype),
            jax.ShapeDtypeStruct((B, S, C_out, 1), jnp.float32),
        ),
        grid_spec=pltpu.PrefetchScalarGridSpec(
            num_scalar_prefetch=0,
            grid=(B, S, tps),                  # N-tile axis last (accumulator)
            in_specs=[
                pl.BlockSpec((1, C_in, tn), x_index),
                # Constant-index weight/shift blocks stay resident across the
                # inner N-tile axis.
                pl.BlockSpec(params["w1"].shape, const),
                pl.BlockSpec(params["t1"].shape, const),
                pl.BlockSpec(params["w2"].shape, const),
                pl.BlockSpec(params["t2"].shape, const),
                pl.BlockSpec(params["w3"].shape, const),
                pl.BlockSpec(params["t3"].shape, const),
                pl.BlockSpec(params["w4"].shape, const),
                pl.BlockSpec(params["t4"].shape, const),
            ],
            out_specs=[
                pl.BlockSpec((1, C_out, tn), ori_index),
                pl.BlockSpec((1, 1, C_out, 1), max_index),   # resident max
            ],
        ),
        compiler_params=pltpu.CompilerParams(
            dimension_semantics=("parallel", "parallel", "arbitrary"),
            vmem_limit_bytes=cfg["vmem"]),
    )(x_ncw,
      params["w1"], params["t1"],
      params["w2"], params["t2"],
      params["w3"], params["t3"],
      params["w4"], params["t4"])

    x_max = jnp.max(out_max, axis=1).reshape(B, C_out)   # reduce split halves
    return x_max, out_ori


# ----------------------------------------------------------------------------
# Parameters + pure-JAX reference
# ----------------------------------------------------------------------------

def make_params(key, input_dim, x_mult=1, outchannel=512):
    """Deterministic synthetic Conv1d + eval-mode BN params.

    Eval BN is folded:  y*scale + shift with scale = gamma/sqrt(var+eps),
    shift = (bias - mean)*scale + beta; the scale is further folded into the
    conv weight rows, so the kernel only does a shift-add after each matmul.
    """
    out_ch = 256 if outchannel == 256 else 512 * x_mult
    dims = [input_dim, 64 * x_mult, 128 * x_mult, 256 * x_mult, out_ch]
    eps = 1e-5
    params = {}
    for i in range(4):
        c_in, c_out = dims[i], dims[i + 1]
        key, kw, kb, kg, kbe, km, kv = jax.random.split(key, 7)
        w = jax.random.normal(kw, (c_out, c_in), jnp.float32) * 0.1   # Conv1d weight (C_out, C_in, 1) squeezed
        b = jax.random.normal(kb, (c_out,), jnp.float32) * 0.1        # Conv1d bias
        gamma = 1.0 + 0.1 * jax.random.normal(kg, (c_out,), jnp.float32)
        beta = 0.1 * jax.random.normal(kbe, (c_out,), jnp.float32)
        mean = 0.1 * jax.random.normal(km, (c_out,), jnp.float32)
        var = jnp.abs(jax.random.normal(kv, (c_out,), jnp.float32)) + 0.5
        scale = gamma / jnp.sqrt(var + eps)
        shift = (b - mean) * scale + beta
        w_folded = w * scale[:, None]                                  # fold BN scale into weight
        params[f"w{i+1}"] = w_folded.astype(jnp.bfloat16)              # kernel weights (bf16 MXU)
        params[f"t{i+1}"] = shift.reshape(c_out, 1)                    # per-channel shift (f32)
    return params


def _reference_forward(x_ncw, params):
    """Pure-JAX reference (channel-first, same bf16 weights the kernel sees)."""
    h = x_ncw                                                          # (B, C_in, N)
    for i in range(1, 5):
        w = params[f"w{i}"].astype(jnp.float32)
        h = jnp.einsum("oc,bcn->bon", w, h) + params[f"t{i}"][None]
        if i < 4:
            h = jnp.maximum(h, 0.0)
    x_ori = h
    x_max = jnp.max(x_ori, axis=2)
    return x_max, x_ori


if __name__ == "__main__":
    key = jax.random.PRNGKey(0)
    B, C_IN, N = 2, 4, 16
    key, kx = jax.random.split(key)
    x = jax.random.normal(kx, (B, C_IN, N), jnp.float32)

    params = make_params(key, input_dim=C_IN, x_mult=1, outchannel=256)

    x_max, x_ori = pointnet_feat_forward(x, params)
    jax.block_until_ready((x_max, x_ori))

    ref_max, ref_ori = _reference_forward(x, params)
    assert x_max.shape == (B, 256) and x_ori.shape == (B, 256, N)
    # bf16 MXU inputs (+ bf16 epilogue on v6e/v7x) vs f32 reference.
    assert jnp.allclose(x_max, ref_max, atol=3e-2, rtol=3e-2)
    assert jnp.allclose(x_ori, ref_ori, atol=3e-2, rtol=3e-2)

    print("KERNEL_OK")
</pallas_src>

<mosaic_0001>
module attributes {stable_mosaic.version = 11 : i64} {
  func.func @_pointnet_kernel(%arg0: i32, %arg1: i32, %arg2: i32, %arg3: memref<1x4x16xf32, #tpu.memory_space<vmem>>, %arg4: memref<64x4xbf16, #tpu.memory_space<vmem>>, %arg5: memref<64x1xf32, #tpu.memory_space<vmem>>, %arg6: memref<128x64xbf16, #tpu.memory_space<vmem>>, %arg7: memref<128x1xf32, #tpu.memory_space<vmem>>, %arg8: memref<256x128xbf16, #tpu.memory_space<vmem>>, %arg9: memref<256x1xf32, #tpu.memory_space<vmem>>, %arg10: memref<256x256xbf16, #tpu.memory_space<vmem>>, %arg11: memref<256x1xf32, #tpu.memory_space<vmem>>, %arg12: memref<1x256x16xf32, #tpu.memory_space<vmem>>, %arg13: memref<1x1x256x1xf32, #tpu.memory_space<vmem>>) attributes {dimension_semantics = [#tpu.dimension_semantics<parallel>, #tpu.dimension_semantics<parallel>, #tpu.dimension_semantics<arbitrary>], iteration_bounds = array<i64: 2, 1, 1>, scalar_prefetch = 0 : i64, scratch_operands = 0 : i64, tpu.core_type = #tpu.core_type<tc>, window_params = [{transform_indices = @transform_0, window_bounds = array<i64: 1, 4, 16>}, {pipeline_mode = #tpu.pipeline_mode<synchronous>, transform_indices = @transform_1, window_bounds = array<i64: 64, 4>}, {pipeline_mode = #tpu.pipeline_mode<synchronous>, transform_indices = @transform_2, window_bounds = array<i64: 64, 1>}, {pipeline_mode = #tpu.pipeline_mode<synchronous>, transform_indices = @transform_3, window_bounds = array<i64: 128, 64>}, {pipeline_mode = #tpu.pipeline_mode<synchronous>, transform_indices = @transform_4, window_bounds = array<i64: 128, 1>}, {pipeline_mode = #tpu.pipeline_mode<synchronous>, transform_indices = @transform_5, window_bounds = array<i64: 256, 128>}, {pipeline_mode = #tpu.pipeline_mode<synchronous>, transform_indices = @transform_6, window_bounds = array<i64: 256, 1>}, {pipeline_mode = #tpu.pipeline_mode<synchronous>, transform_indices = @transform_7, window_bounds = array<i64: 256, 256>}, {pipeline_mode = #tpu.pipeline_mode<synchronous>, transform_indices = @transform_8, window_bounds = array<i64: 256, 1>}, {transform_indices = @transform_9, window_bounds = array<i64: 1, 256, 16>}, {transform_indices = @transform_10, window_bounds = array<i64: 1, 1, 256, 1>}]} {
    %c0 = arith.constant 0 : index
    %c0_0 = arith.constant 0 : index
    %c0_1 = arith.constant 0 : index
    %0 = vector.load %arg3[%c0, %c0_0, %c0_1] : memref<1x4x16xf32, #tpu.memory_space<vmem>>, vector<1x4x16xf32>
    %1 = vector.shape_cast %0 : vector<1x4x16xf32> to vector<4x16xf32>
    %2 = arith.truncf %1 : vector<4x16xf32> to vector<4x16xbf16>
    %c0_2 = arith.constant 0 : index
    %c0_3 = arith.constant 0 : index
    %3 = vector.load %arg4[%c0_2, %c0_3] : memref<64x4xbf16, #tpu.memory_space<vmem>>, vector<64x4xbf16>
    %cst = arith.constant dense<0.000000e+00> : vector<64x16xf32>
    %4 = tpu.matmul %3, %2, %cst {dimension_numbers = #tpu.dot_dimension_numbers<[1], [0], [0], [1], [0, 0, 1, 1], [], []>} : vector<64x4xbf16>, vector<4x16xbf16>, vector<64x16xf32> -> vector<64x16xf32>
    %c0_4 = arith.constant 0 : index
    %c0_5 = arith.constant 0 : index
    %5 = vector.load %arg5[%c0_4, %c0_5] : memref<64x1xf32, #tpu.memory_space<vmem>>, vector<64x1xf32>
    %6 = vector.broadcast %5 : vector<64x1xf32> to vector<64x16xf32>
    %7 = arith.addf %4, %6 : vector<64x16xf32>
    %cst_6 = arith.constant 0.000000e+00 : f32
    %8 = vector.broadcast %cst_6 : f32 to vector<64x16xf32>
    %9 = arith.maximumf %7, %8 : vector<64x16xf32>
    %10 = arith.truncf %9 : vector<64x16xf32> to vector<64x16xbf16>
    %c0_7 = arith.constant 0 : index
    %c0_8 = arith.constant 0 : index
    %11 = vector.load %arg6[%c0_7, %c0_8] : memref<128x64xbf16, #tpu.memory_space<vmem>>, vector<128x64xbf16>
    %cst_9 = arith.constant dense<0.000000e+00> : vector<128x16xf32>
    %12 = tpu.matmul %11, %10, %cst_9 {dimension_numbers = #tpu.dot_dimension_numbers<[1], [0], [0], [1], [0, 0, 1, 1], [], []>} : vector<128x64xbf16>, vector<64x16xbf16>, vector<128x16xf32> -> vector<128x16xf32>
    %c0_10 = arith.constant 0 : index
    %c0_11 = arith.constant 0 : index
    %13 = vector.load %arg7[%c0_10, %c0_11] : memref<128x1xf32, #tpu.memory_space<vmem>>, vector<128x1xf32>
    %14 = vector.broadcast %13 : vector<128x1xf32> to vector<128x16xf32>
    %15 = arith.addf %12, %14 : vector<128x16xf32>
    %cst_12 = arith.constant 0.000000e+00 : f32
    %16 = vector.broadcast %cst_12 : f32 to vector<128x16xf32>
    %17 = arith.maximumf %15, %16 : vector<128x16xf32>
    %18 = arith.truncf %17 : vector<128x16xf32> to vector<128x16xbf16>
    %c0_13 = arith.constant 0 : index
    %c0_14 = arith.constant 0 : index
    %19 = vector.load %arg8[%c0_13, %c0_14] : memref<256x128xbf16, #tpu.memory_space<vmem>>, vector<256x128xbf16>
    %cst_15 = arith.constant dense<0.000000e+00> : vector<256x16xf32>
    %20 = tpu.matmul %19, %18, %cst_15 {dimension_numbers = #tpu.dot_dimension_numbers<[1], [0], [0], [1], [0, 0, 1, 1], [], []>} : vector<256x128xbf16>, vector<128x16xbf16>, vector<256x16xf32> -> vector<256x16xf32>
    %c0_16 = arith.constant 0 : index
    %c0_17 = arith.constant 0 : index
    %21 = vector.load %arg9[%c0_16, %c0_17] : memref<256x1xf32, #tpu.memory_space<vmem>>, vector<256x1xf32>
    %22 = vector.broadcast %21 : vector<256x1xf32> to vector<256x16xf32>
    %23 = arith.addf %20, %22 : vector<256x16xf32>
    %cst_18 = arith.constant 0.000000e+00 : f32
    %24 = vector.broadcast %cst_18 : f32 to vector<256x16xf32>
    %25 = arith.maximumf %23, %24 : vector<256x16xf32>
    %26 = arith.truncf %25 : vector<256x16xf32> to vector<256x16xbf16>
    %c0_19 = arith.constant 0 : index
    %c0_20 = arith.constant 0 : index
    %27 = vector.load %arg10[%c0_19, %c0_20] : memref<256x256xbf16, #tpu.memory_space<vmem>>, vector<256x256xbf16>
    %cst_21 = arith.constant dense<0.000000e+00> : vector<256x16xf32>
    %28 = tpu.matmul %27, %26, %cst_21 {dimension_numbers = #tpu.dot_dimension_numbers<[1], [0], [0], [1], [0, 0, 1, 1], [], []>} : vector<256x256xbf16>, vector<256x16xbf16>, vector<256x16xf32> -> vector<256x16xf32>
    %c0_22 = arith.constant 0 : index
    %c0_23 = arith.constant 0 : index
    %29 = vector.load %arg11[%c0_22, %c0_23] : memref<256x1xf32, #tpu.memory_space<vmem>>, vector<256x1xf32>
    %30 = vector.broadcast %29 : vector<256x1xf32> to vector<256x16xf32>
    %31 = arith.addf %28, %30 : vector<256x16xf32>
    %c0_24 = arith.constant 0 : index
    %c0_25 = arith.constant 0 : index
    %c0_26 = arith.constant 0 : index
    %32 = vector.load %arg12[%c0_24, %c0_25, %c0_26] : memref<1x256x16xf32, #tpu.memory_space<vmem>>, vector<1x256x16xf32>
    %33 = vector.shape_cast %32 : vector<1x256x16xf32> to vector<256x16xf32>
    %34 = vector.shape_cast %31 : vector<256x16xf32> to vector<1x256x16xf32>
    tpu.vector_store %arg12[%c0_24, %c0_25, %c0_26], %34 {strides = array<i32>} : memref<1x256x16xf32, #tpu.memory_space<vmem>>, vector<1x256x16xf32>,
    %cst_27 = arith.constant dense<0xFF800000> : vector<256xf32>
    %35 = vector.multi_reduction <maximumf>, %31, %cst_27 [1] : vector<256x16xf32> to vector<256xf32>
    %36 = vector.shape_cast %35 : vector<256xf32> to vector<256x1xf32>
    %c0_i32 = arith.constant 0 : i32
    %37 = arith.cmpi eq, %arg2, %c0_i32 : i32
    %38 = arith.extui %37 : i1 to i32
    %c0_i32_28 = arith.constant 0 : i32
    %39 = arith.cmpi ne, %38, %c0_i32_28 : i32
    scf.if %39 {
      %c0_31 = arith.constant 0 : index
      %c0_32 = arith.constant 0 : index
      %c0_33 = arith.constant 0 : index
      %c0_34 = arith.constant 0 : index
      %43 = vector.load %arg13[%c0_31, %c0_32, %c0_33, %c0_34] : memref<1x1x256x1xf32, #tpu.memory_space<vmem>>, vector<1x1x256x1xf32>
      %44 = vector.shape_cast %43 : vector<1x1x256x1xf32> to vector<256x1xf32>
      %45 = vector.shape_cast %36 : vector<256x1xf32> to vector<1x1x256x1xf32>
      tpu.vector_store %arg13[%c0_31, %c0_32, %c0_33, %c0_34], %45 {strides = array<i32>} : memref<1x1x256x1xf32, #tpu.memory_space<vmem>>, vector<1x1x256x1xf32>,
    } else {
    }
    %c0_i32_29 = arith.constant 0 : i32
    %40 = arith.cmpi ne, %arg2, %c0_i32_29 : i32
    %41 = arith.extui %40 : i1 to i32
    %c0_i32_30 = arith.constant 0 : i32
    %42 = arith.cmpi ne, %41, %c0_i32_30 : i32
    scf.if %42 {
      %c0_31 = arith.constant 0 : index
      %c0_32 = arith.constant 0 : index
      %c0_33 = arith.constant 0 : index
      %c0_34 = arith.constant 0 : index
      %43 = vector.load %arg13[%c0_31, %c0_32, %c0_33, %c0_34] : memref<1x1x256x1xf32, #tpu.memory_space<vmem>>, vector<1x1x256x1xf32>
      %44 = vector.shape_cast %43 : vector<1x1x256x1xf32> to vector<256x1xf32>
      %45 = arith.maximumf %44, %36 : vector<256x1xf32>
      %c0_35 = arith.constant 0 : index
      %c0_36 = arith.constant 0 : index
      %c0_37 = arith.constant 0 : index
      %c0_38 = arith.constant 0 : index
      %46 = vector.load %arg13[%c0_35, %c0_36, %c0_37, %c0_38] : memref<1x1x256x1xf32, #tpu.memory_space<vmem>>, vector<1x1x256x1xf32>
      %47 = vector.shape_cast %46 : vector<1x1x256x1xf32> to vector<256x1xf32>
      %48 = vector.shape_cast %45 : vector<256x1xf32> to vector<1x1x256x1xf32>
      tpu.vector_store %arg13[%c0_35, %c0_36, %c0_37, %c0_38], %48 {strides = array<i32>} : memref<1x1x256x1xf32, #tpu.memory_space<vmem>>, vector<1x1x256x1xf32>,
    } else {
    }
    return
  }
  func.func @transform_0(%arg0: i32, %arg1: i32, %arg2: i32) -> (i32, i32, i32) {
    %c1_i32 = arith.constant 1 : i32
    %0 = arith.muli %arg1, %c1_i32 : i32
    %1 = arith.addi %0, %arg2 : i32
    %c0_i32 = arith.constant 0 : i32
    %c0_i32_0 = arith.constant 0 : i32
    return %arg0, %c0_i32, %1 : i32, i32, i32
  }
  func.func @transform_1(%arg0: i32, %arg1: i32, %arg2: i32) -> (i32, i32) {
    %c0_i32 = arith.constant 0 : i32
    %c0_i32_0 = arith.constant 0 : i32
    %c0_i32_1 = arith.constant 0 : i32
    return %c0_i32, %c0_i32_0 : i32, i32
  }
  func.func @transform_2(%arg0: i32, %arg1: i32, %arg2: i32) -> (i32, i32) {
    %c0_i32 = arith.constant 0 : i32
    %c0_i32_0 = arith.constant 0 : i32
    %c0_i32_1 = arith.constant 0 : i32
    return %c0_i32, %c0_i32_0 : i32, i32
  }
  func.func @transform_3(%arg0: i32, %arg1: i32, %arg2: i32) -> (i32, i32) {
    %c0_i32 = arith.constant 0 : i32
    %c0_i32_0 = arith.constant 0 : i32
    %c0_i32_1 = arith.constant 0 : i32
    return %c0_i32, %c0_i32_0 : i32, i32
  }
  func.func @transform_4(%arg0: i32, %arg1: i32, %arg2: i32) -> (i32, i32) {
    %c0_i32 = arith.constant 0 : i32
    %c0_i32_0 = arith.constant 0 : i32
    %c0_i32_1 = arith.constant 0 : i32
    return %c0_i32, %c0_i32_0 : i32, i32
  }
  func.func @transform_5(%arg0: i32, %arg1: i32, %arg2: i32) -> (i32, i32) {
    %c0_i32 = arith.constant 0 : i32
    %c0_i32_0 = arith.constant 0 : i32
    %c0_i32_1 = arith.constant 0 : i32
    return %c0_i32, %c0_i32_0 : i32, i32
  }
  func.func @transform_6(%arg0: i32, %arg1: i32, %arg2: i32) -> (i32, i32) {
    %c0_i32 = arith.constant 0 : i32
    %c0_i32_0 = arith.constant 0 : i32
    %c0_i32_1 = arith.constant 0 : i32
    return %c0_i32, %c0_i32_0 : i32, i32
  }
  func.func @transform_7(%arg0: i32, %arg1: i32, %arg2: i32) -> (i32, i32) {
    %c0_i32 = arith.constant 0 : i32
    %c0_i32_0 = arith.constant 0 : i32
    %c0_i32_1 = arith.constant 0 : i32
    return %c0_i32, %c0_i32_0 : i32, i32
  }
  func.func @transform_8(%arg0: i32, %arg1: i32, %arg2: i32) -> (i32, i32) {
    %c0_i32 = arith.constant 0 : i32
    %c0_i32_0 = arith.constant 0 : i32
    %c0_i32_1 = arith.constant 0 : i32
    return %c0_i32, %c0_i32_0 : i32, i32
  }
  func.func @transform_9(%arg0: i32, %arg1: i32, %arg2: i32) -> (i32, i32, i32) {
    %c1_i32 = arith.constant 1 : i32
    %0 = arith.muli %arg1, %c1_i32 : i32
    %1 = arith.addi %0, %arg2 : i32
    %c0_i32 = arith.constant 0 : i32
    %c0_i32_0 = arith.constant 0 : i32
    return %arg0, %c0_i32, %1 : i32, i32, i32
  }
  func.func @transform_10(%arg0: i32, %arg1: i32, %arg2: i32) -> (i32, i32, i32, i32) {
    %c0_i32 = arith.constant 0 : i32
    %c0_i32_0 = arith.constant 0 : i32
    %c0_i32_1 = arith.constant 0 : i32
    return %arg0, %arg1, %c0_i32, %c0_i32_0 : i32, i32, i32, i32
  }
}

</mosaic_0001>

<llo_original>
// kernel: tpu_custom_call.1
$region0: #{tpu_custom_call.1}
  #allocation0 [shape = 'u32[]', space=smem, size = 0x4, offset = 0x4, fixed_abs, tag = 'smem constant byte address 0x4 - core index']
  #allocation1 [shape = 'u32[144,128]{1,0:T(1,128)}', space=vmem, size = 0x12000, scoped, tag = 'internal scratch']
  %s0 = inlined_call_operand.vmem [shape: f32[2,4,16], index: 0, kind: input, shape index: {}]
  %s1 = inlined_call_operand.vmem [shape: bf16[64,4], index: 1, kind: input, shape index: {}]
  %s2 = inlined_call_operand.vmem [shape: f32[64,1], index: 2, kind: input, shape index: {}]
  %s3 = inlined_call_operand.vmem [shape: bf16[128,64], index: 3, kind: input, shape index: {}]
  %s4 = inlined_call_operand.vmem [shape: f32[128,1], index: 4, kind: input, shape index: {}]
  %s5 = inlined_call_operand.vmem [shape: bf16[256,128], index: 5, kind: input, shape index: {}]
  %s6 = inlined_call_operand.vmem [shape: f32[256,1], index: 6, kind: input, shape index: {}]
  %s7 = inlined_call_operand.vmem [shape: bf16[256,256], index: 7, kind: input, shape index: {}]
  %s8 = inlined_call_operand.vmem [shape: f32[256,1], index: 8, kind: input, shape index: {}]
  %s9 = inlined_call_operand.vmem [shape: f32[2,256,16], index: 9, kind: output, shape index: {0}]
  %s10 = inlined_call_operand.vmem [shape: f32[2,1,256,1], index: 10, kind: output, shape index: {1}]
  %11 = xla_tuple %s9, %s10
  %s12 = sld [smem:[#allocation0]]
  $region85: #{tpu_custom_call.1} parent=0
    _
  %s14 = ssub.s32 1, %s12
  %s15 = scalar_select 0, %s14, %s12
  loop: start=0, step=1, limit=4
  $region2: #{tpu_custom_call.1} parent=0 // loop_pre_header
    _
  $region3: #{tpu_custom_call.1} parent=0 // loop_header
    %s17 = sphi 0, %s21
    %p18 = scmp.ge.s32.totalorder %s17, 4
    %s24 = sphi 0, %s43
    %s25 = sphi 0, %s39
    %s26 = sphi 0, %s35
    %s27 = sphi 0, %s24
    %s28 = sphi 0, %s25
    %s29 = sphi 0, %s26
    %s30 = sphi 0, %s27
    %s31 = sphi 0, %s28
    %s32 = sphi 0, %s29
    %s50 = sphi 0, %s52
    %s53 = sphi 0, %s50
    %s54 = sphi 0, %s53
    %s70 = sphi 0, %s54
    %s74 = sphi 0, %s74
    %s76 = sphi 0, %s74
    %s77 = sphi 0, %s76
    %s91 = sphi 0, %s77
    %s95 = sphi 0, %s95
    %s97 = sphi 0, %s95
    %s98 = sphi 0, %s97
    %s112 = sphi 0, %s98
    %s116 = sphi 0, %s116
    %s118 = sphi 0, %s116
    %s119 = sphi 0, %s118
    %s133 = sphi 0, %s119
    %s137 = sphi 0, %s137
    %s139 = sphi 0, %s137
    %s140 = sphi 0, %s139
    %s154 = sphi 0, %s140
    %s158 = sphi 0, %s158
    %s160 = sphi 0, %s158
    %s161 = sphi 0, %s160
    %s175 = sphi 0, %s161
    %s179 = sphi 0, %s179
    %s181 = sphi 0, %s179
    %s182 = sphi 0, %s181
    %s196 = sphi 0, %s182
    %s200 = sphi 0, %s200
    %s202 = sphi 0, %s200
    %s203 = sphi 0, %s202
    %s217 = sphi 0, %s203
    %s221 = sphi 0, %s221
    %s223 = sphi 0, %s221
    %s224 = sphi 0, %s223
    %s238 = sphi 0, %s224
    %s248 = sphi 0, %s250
    %s251 = sphi 0, %s248
    %s252 = sphi 0, %s251
    %s268 = sphi 0, %s252
    %s276 = sphi 0, %s278
    %s279 = sphi 0, %s276
    %s280 = sphi 0, %s279
    %s296 = sphi 0, %s280
  $region4: #{tpu_custom_call.1} parent=0 // loop_header_branch
    %20 = sbr.rel (%p18) target = $region8
  $region5: #{tpu_custom_call.1} parent=0 // loop_body
    %s22 = ssub.s32 %s17, 1
    %s23 = ssub.s32 %s17, 2
    %s33 = sadd.s32 1, %s26
    %p34 = scmp.ge.s32.totalorder %s33, 1
    %s35 = scalar_select %p34, 0, %s33
    %s36 = sadd.s32 1, %s25
    %s37 = scalar_select %p34, %s36, %s25
    %p38 = scmp.ge.s32.totalorder %s37, 1
    %s39 = scalar_select %p38, 0, %s37
    %s40 = sadd.s32 1, %s24
    %s41 = scalar_select %p38, %s40, %s24
    %p42 = scmp.ge.s32.totalorder %s41, 2
    %s43 = scalar_select %p42, 0, %s41
    %s44 = sadd.s32 %s25, %s26
    %s45 = sadd.s32 %s39, %s35
    %s46 = ssub.s32 %s24, %s43
    %s47 = ssub.s32 %s44, %s45
    %s48 = sor.u32 %s46, %s47
    %p49 = scmp.eq.s32.totalorder %s48, 0
    %s51 = sadd.s32 %s50, 1
    %s52 = scalar_select %p49, %s50, %s51
    %p55 = pneg %p49
    %p56 = scmp.eq.s32.totalorder %s17, 1
    %p57 = por %p55, %p56
    %p58 = scmp.ne.s32.totalorder %s50, %s53
    %p59 = scmp.eq.s32.totalorder %s17, 0
    %p60 = por %p58, %p59
    %p61 = scmp.ne.s32.totalorder %s50, %s53
    %p62 = scmp.eq.s32.totalorder %s22, 1
    %p63 = por %p61, %p62
    %p64 = scmp.ne.s32.totalorder %s53, %s54
    %p65 = scmp.eq.s32.totalorder %s22, 0
    %p66 = por %p64, %p65
    %p67 = scmp.ne.s32.totalorder %s53, %s54
    %p68 = scmp.eq.s32.totalorder %s23, 1
    %p69 = por %p67, %p68
    %p71 = scmp.ne.s32.totalorder %s54, %s70
    %p72 = scmp.eq.s32.totalorder %s23, 0
    %p73 = por %p71, %p72
    %s75 = sadd.s32 %s74, 1
    %p78 = scmp.eq.s32.totalorder %s17, 1
    %p79 = scmp.ne.s32.totalorder %s74, %s76
    %p80 = scmp.eq.s32.totalorder %s17, 0
    %p81 = por %p79, %p80
    %p82 = scmp.ne.s32.totalorder %s74, %s76
    %p83 = scmp.eq.s32.totalorder %s22, 1
    %p84 = por %p82, %p83
    %p85 = scmp.ne.s32.totalorder %s76, %s77
    %p86 = scmp.eq.s32.totalorder %s22, 0
    %p87 = por %p85, %p86
    %p88 = scmp.ne.s32.totalorder %s76, %s77
    %p89 = scmp.eq.s32.totalorder %s23, 1
    %p90 = por %p88, %p89
    %p92 = scmp.ne.s32.totalorder %s77, %s91
    %p93 = scmp.eq.s32.totalorder %s23, 0
    %p94 = por %p92, %p93
    %s96 = sadd.s32 %s95, 1
    %p99 = scmp.eq.s32.totalorder %s17, 1
    %p100 = scmp.ne.s32.totalorder %s95, %s97
    %p101 = scmp.eq.s32.totalorder %s17, 0
    %p102 = por %p100, %p101
    %p103 = scmp.ne.s32.totalorder %s95, %s97
    %p104 = scmp.eq.s32.totalorder %s22, 1
    %p105 = por %p103, %p104
    %p106 = scmp.ne.s32.totalorder %s97, %s98
    %p107 = scmp.eq.s32.totalorder %s22, 0
    %p108 = por %p106, %p107
    %p109 = scmp.ne.s32.totalorder %s97, %s98
    %p110 = scmp.eq.s32.totalorder %s23, 1
    %p111 = por %p109, %p110
    %p113 = scmp.ne.s32.totalorder %s98, %s112
    %p114 = scmp.eq.s32.totalorder %s23, 0
    %p115 = por %p113, %p114
    %s117 = sadd.s32 %s116, 1
    %p120 = scmp.eq.s32.totalorder %s17, 1
    %p121 = scmp.ne.s32.totalorder %s116, %s118
    %p122 = scmp.eq.s32.totalorder %s17, 0
    %p123 = por %p121, %p122
    %p124 = scmp.ne.s32.totalorder %s116, %s118
    %p125 = scmp.eq.s32.totalorder %s22, 1
    %p126 = por %p124, %p125
    %p127 = scmp.ne.s32.totalorder %s118, %s119
    %p128 = scmp.eq.s32.totalorder %s22, 0
    %p129 = por %p127, %p128
    %p130 = scmp.ne.s32.totalorder %s118, %s119
    %p131 = scmp.eq.s32.totalorder %s23, 1
    %p132 = por %p130, %p131
    %p134 = scmp.ne.s32.totalorder %s119, %s133
    %p135 = scmp.eq.s32.totalorder %s23, 0
    %p136 = por %p134, %p135
    %s138 = sadd.s32 %s137, 1
    %p141 = scmp.eq.s32.totalorder %s17, 1
    %p142 = scmp.ne.s32.totalorder %s137, %s139
    %p143 = scmp.eq.s32.totalorder %s17, 0
    %p144 = por %p142, %p143
    %p145 = scmp.ne.s32.totalorder %s137, %s139
    %p146 = scmp.eq.s32.totalorder %s22, 1
    %p147 = por %p145, %p146
    %p148 = scmp.ne.s32.totalorder %s139, %s140
    %p149 = scmp.eq.s32.totalorder %s22, 0
    %p150 = por %p148, %p149
    %p151 = scmp.ne.s32.totalorder %s139, %s140
    %p152 = scmp.eq.s32.totalorder %s23, 1
    %p153 = por %p151, %p152
    %p155 = scmp.ne.s32.totalorder %s140, %s154
    %p156 = scmp.eq.s32.totalorder %s23, 0
    %p157 = por %p155, %p156
    %s159 = sadd.s32 %s158, 1
    %p162 = scmp.eq.s32.totalorder %s17, 1
    %p163 = scmp.ne.s32.totalorder %s158, %s160
    %p164 = scmp.eq.s32.totalorder %s17, 0
    %p165 = por %p163, %p164
    %p166 = scmp.ne.s32.totalorder %s158, %s160
    %p167 = scmp.eq.s32.totalorder %s22, 1
    %p168 = por %p166, %p167
    %p169 = scmp.ne.s32.totalorder %s160, %s161
    %p170 = scmp.eq.s32.totalorder %s22, 0
    %p171 = por %p169, %p170
    %p172 = scmp.ne.s32.totalorder %s160, %s161
    %p173 = scmp.eq.s32.totalorder %s23, 1
    %p174 = por %p172, %p173
    %p176 = scmp.ne.s32.totalorder %s161, %s175
    %p177 = scmp.eq.s32.totalorder %s23, 0
    %p178 = por %p176, %p177
    %s180 = sadd.s32 %s179, 1
    %p183 = scmp.eq.s32.totalorder %s17, 1
    %p184 = scmp.ne.s32.totalorder %s179, %s181
    %p185 = scmp.eq.s32.totalorder %s17, 0
    %p186 = por %p184, %p185
    %p187 = scmp.ne.s32.totalorder %s179, %s181
    %p188 = scmp.eq.s32.totalorder %s22, 1
    %p189 = por %p187, %p188
    %p190 = scmp.ne.s32.totalorder %s181, %s182
    %p191 = scmp.eq.s32.totalorder %s22, 0
    %p192 = por %p190, %p191
    %p193 = scmp.ne.s32.totalorder %s181, %s182
    %p194 = scmp.eq.s32.totalorder %s23, 1
    %p195 = por %p193, %p194
    %p197 = scmp.ne.s32.totalorder %s182, %s196
    %p198 = scmp.eq.s32.totalorder %s23, 0
    %p199 = por %p197, %p198
    %s201 = sadd.s32 %s200, 1
    %p204 = scmp.eq.s32.totalorder %s17, 1
    %p205 = scmp.ne.s32.totalorder %s200, %s202
    %p206 = scmp.eq.s32.totalorder %s17, 0
    %p207 = por %p205, %p206
    %p208 = scmp.ne.s32.totalorder %s200, %s202
    %p209 = scmp.eq.s32.totalorder %s22, 1
    %p210 = por %p208, %p209
    %p211 = scmp.ne.s32.totalorder %s202, %s203
    %p212 = scmp.eq.s32.totalorder %s22, 0
    %p213 = por %p211, %p212
    %p214 = scmp.ne.s32.totalorder %s202, %s203
    %p215 = scmp.eq.s32.totalorder %s23, 1
    %p216 = por %p214, %p215
    %p218 = scmp.ne.s32.totalorder %s203, %s217
    %p219 = scmp.eq.s32.totalorder %s23, 0
    %p220 = por %p218, %p219
    %s222 = sadd.s32 %s221, 1
    %p225 = scmp.eq.s32.totalorder %s17, 1
    %p226 = scmp.ne.s32.totalorder %s221, %s223
    %p227 = scmp.eq.s32.totalorder %s17, 0
    %p228 = por %p226, %p227
    %p229 = scmp.ne.s32.totalorder %s221, %s223
    %p230 = scmp.eq.s32.totalorder %s22, 1
    %p231 = por %p229, %p230
    %p232 = scmp.ne.s32.totalorder %s223, %s224
    %p233 = scmp.eq.s32.totalorder %s22, 0
    %p234 = por %p232, %p233
    %p235 = scmp.ne.s32.totalorder %s223, %s224
    %p236 = scmp.eq.s32.totalorder %s23, 1
    %p237 = por %p235, %p236
    %p239 = scmp.ne.s32.totalorder %s224, %s238
    %p240 = scmp.eq.s32.totalorder %s23, 0
    %p241 = por %p239, %p240
    %s242 = sadd.s32 %s25, %s26
    %s243 = sadd.s32 %s39, %s35
    %s244 = ssub.s32 %s24, %s43
    %s245 = ssub.s32 %s242, %s243
    %s246 = sor.u32 %s244, %s245
    %p247 = scmp.eq.s32.totalorder %s246, 0
    %s249 = sadd.s32 %s248, 1
    %s250 = scalar_select %p247, %s248, %s249
    %p253 = pneg %p247
    %p254 = scmp.eq.s32.totalorder %s17, 1
    %p255 = por %p253, %p254
    %p256 = scmp.ne.s32.totalorder %s248, %s251
    %p257 = scmp.eq.s32.totalorder %s17, 0
    %p258 = por %p256, %p257
    %p259 = scmp.ne.s32.totalorder %s248, %s251
    %p260 = scmp.eq.s32.totalorder %s22, 1
    %p261 = por %p259, %p260
    %p262 = scmp.ne.s32.totalorder %s251, %s252
    %p263 = scmp.eq.s32.totalorder %s22, 0
    %p264 = por %p262, %p263
    %p265 = scmp.ne.s32.totalorder %s251, %s252
    %p266 = scmp.eq.s32.totalorder %s23, 1
    %p267 = por %p265, %p266
    %p269 = scmp.ne.s32.totalorder %s252, %s268
    %p270 = scmp.eq.s32.totalorder %s23, 0
    %p271 = por %p269, %p270
    %s272 = ssub.s32 %s24, %s43
    %s273 = ssub.s32 %s25, %s39
    %s274 = sor.u32 %s272, %s273
    %p275 = scmp.eq.s32.totalorder %s274, 0
    %s277 = sadd.s32 %s276, 1
    %s278 = scalar_select %p275, %s276, %s277
    %p281 = pneg %p275
    %p282 = scmp.eq.s32.totalorder %s17, 1
    %p283 = por %p281, %p282
    %p284 = scmp.ne.s32.totalorder %s276, %s279
    %p285 = scmp.eq.s32.totalorder %s17, 0
    %p286 = por %p284, %p285
    %p287 = scmp.ne.s32.totalorder %s276, %s279
    %p288 = scmp.eq.s32.totalorder %s22, 1
    %p289 = por %p287, %p288
    %p290 = scmp.ne.s32.totalorder %s279, %s280
    %p291 = scmp.eq.s32.totalorder %s22, 0
    %p292 = por %p290, %p291
    %p293 = scmp.ne.s32.totalorder %s279, %s280
    %p294 = scmp.eq.s32.totalorder %s23, 1
    %p295 = por %p293, %p294
    %p297 = scmp.ne.s32.totalorder %s280, %s296
    %p298 = scmp.eq.s32.totalorder %s23, 0
    %p299 = por %p297, %p298
    %p300 = scmp.le.s32.totalorder 1, %s17
    %p301 = scmp.lt.s32.totalorder %s17, 3
    %p302 = pnand %p300, %p301
    %p303 = pneg %p302
    // Predicated region
    $region9: #{tpu_custom_call.1} parent=5 // pred_check
      _
    $region10: #{tpu_custom_call.1} parent=5 // pred_check_branch
      %305 = sbr.rel (%p302) target = $region12
    $region11: #{tpu_custom_call.1} parent=5 // pred_region
      %s306 = ssub.s32 %s17, 1
      // Predicated region
      $region13: #{tpu_custom_call.1} parent=11 // pred_check
        %p307 = pneg %p87
      $region14: #{tpu_custom_call.1} parent=11 // pred_check_branch
        %309 = sbr.rel (%p307) target = $region16
      $region15: #{tpu_custom_call.1} parent=11 // pred_region
        _
      $region16: #{tpu_custom_call.1} parent=11 // pred_fallthru
        _
      // Predicated region
      $region17: #{tpu_custom_call.1} parent=11 // pred_check
        %p310 = pneg %p108
      $region18: #{tpu_custom_call.1} parent=11 // pred_check_branch
        %312 = sbr.rel (%p310) target = $region20
      $region19: #{tpu_custom_call.1} parent=11 // pred_region
        _
      $region20: #{tpu_custom_call.1} parent=11 // pred_fallthru
        _
      // Predicated region
      $region21: #{tpu_custom_call.1} parent=11 // pred_check
        %p313 = pneg %p129
      $region22: #{tpu_custom_call.1} parent=11 // pred_check_branch
        %315 = sbr.rel (%p313) target = $region24
      $region23: #{tpu_custom_call.1} parent=11 // pred_region
        _
      $region24: #{tpu_custom_call.1} parent=11 // pred_fallthru
        _
      // Predicated region
      $region25: #{tpu_custom_call.1} parent=11 // pred_check
        %p316 = pneg %p150
      $region26: #{tpu_custom_call.1} parent=11 // pred_check_branch
        %318 = sbr.rel (%p316) target = $region28
      $region27: #{tpu_custom_call.1} parent=11 // pred_region
        _
      $region28: #{tpu_custom_call.1} parent=11 // pred_fallthru
        _
      // Predicated region
      $region29: #{tpu_custom_call.1} parent=11 // pred_check
        %p319 = pneg %p171
      $region30: #{tpu_custom_call.1} parent=11 // pred_check_branch
        %321 = sbr.rel (%p319) target = $region32
      $region31: #{tpu_custom_call.1} parent=11 // pred_region
        _
      $region32: #{tpu_custom_call.1} parent=11 // pred_fallthru
        _
      // Predicated region
      $region33: #{tpu_custom_call.1} parent=11 // pred_check
        %p322 = pneg %p192
      $region34: #{tpu_custom_call.1} parent=11 // pred_check_branch
        %324 = sbr.rel (%p322) target = $region36
      $region35: #{tpu_custom_call.1} parent=11 // pred_region
        _
      $region36: #{tpu_custom_call.1} parent=11 // pred_fallthru
        _
      // Predicated region
      $region37: #{tpu_custom_call.1} parent=11 // pred_check
        %p325 = pneg %p213
      $region38: #{tpu_custom_call.1} parent=11 // pred_check_branch
        %327 = sbr.rel (%p325) target = $region40
      $region39: #{tpu_custom_call.1} parent=11 // pred_region
        _
      $region40: #{tpu_custom_call.1} parent=11 // pred_fallthru
        _
      // Predicated region
      $region41: #{tpu_custom_call.1} parent=11 // pred_check
        %p328 = pneg %p234
      $region42: #{tpu_custom_call.1} parent=11 // pred_check_branch
        %330 = sbr.rel (%p328) target = $region44
      $region43: #{tpu_custom_call.1} parent=11 // pred_region
        _
      $region44: #{tpu_custom_call.1} parent=11 // pred_fallthru
        _
    $region12: #{tpu_custom_call.1} parent=5 // pred_fallthru
      _
    %p331 = scmp.lt.s32.totalorder %s17, 2
    // Predicated region
    $region45: #{tpu_custom_call.1} parent=5 // pred_check
      %p332 = pneg %p331
    $region46: #{tpu_custom_call.1} parent=5 // pred_check_branch
      %334 = sbr.rel (%p332) target = $region48
    $region47: #{tpu_custom_call.1} parent=5 // pred_region
      // Predicated region
      $region49: #{tpu_custom_call.1} parent=47 // pred_check
        %p335 = pneg %p60
      $region50: #{tpu_custom_call.1} parent=47 // pred_check_branch
        %337 = sbr.rel (%p335) target = $region52
      $region51: #{tpu_custom_call.1} parent=47 // pred_region
        %s338 = sadd.s32 %s25, %s26
        %p339 = scmp.lt.s32.totalorder %s24, 1
        %s340 = scalar_select %p339, %s24, 1
        %p341 = scmp.lt.s32.totalorder %s338, 0
        %s342 = scalar_select %p341, %s338, 0
        %s343 = sadd.s32 %s342, %s340
        %s344 = smul.addr %s343, 4
        %s345 = scalar_lea.vmem %s0, %s344
        %s346 = sadd.s32 %s25, %s26
      $region52: #{tpu_custom_call.1} parent=47 // pred_fallthru
        _
    $region48: #{tpu_custom_call.1} parent=5 // pred_fallthru
      _
    %p347 = scmp.le.s32.totalorder 1, %s17
    %p348 = scmp.lt.s32.totalorder %s17, 3
    %p349 = pnand %p347, %p348
    %p350 = pneg %p349
    // Predicated region
    $region53: #{tpu_custom_call.1} parent=5 // pred_check
      _
    $region54: #{tpu_custom_call.1} parent=5 // pred_check_branch
      %352 = sbr.rel (%p349) target = $region56
    $region55: #{tpu_custom_call.1} parent=5 // pred_region
      %s353 = ssub.s32 %s17, 1
      %s354 = sadd.s32 %s28, %s29
      %p355 = scmp.lt.s32.totalorder %s27, 1
      %s356 = scalar_select %p355, %s27, 1
      %p357 = scmp.lt.s32.totalorder %s354, 0
      %s358 = scalar_select %p357, %s354, 0
      %s359 = sadd.s32 %s358, %s356
      %s360 = smul.addr %s359, 4
      %s361 = scalar_lea.vmem %s0, %s360
      %p362 = pneg %p66
      %p363 = pneg %p63
      %p364 = pneg %p87
      %p365 = pneg %p84
      %p366 = pneg %p108
      %p367 = pneg %p105
      %p368 = pneg %p129
      %p369 = pneg %p126
      %p370 = pneg %p150
      %p371 = pneg %p147
      %p372 = pneg %p171
      %p373 = pneg %p168
      %p374 = pneg %p192
      %p375 = pneg %p189
      %p376 = pneg %p213
      %p377 = pneg %p210
      %p378 = pneg %p234
      %p379 = pneg %p231
      %p380 = pneg %p264
      %p381 = pneg %p261
      %s382 = sadd.s32 %s28, %s29
      %p383 = scmp.lt.s32.totalorder %s27, 1
      %s384 = scalar_select %p383, %s27, 1
      %p385 = scmp.lt.s32.totalorder %s382, 0
      %s386 = scalar_select %p385, %s382, 0
      %s387 = smul.addr %s384, 32
      %s388 = sadd.s32 %s386, %s387
      %s389 = smul.addr %s388, 8
      %s390 = scalar_lea.vmem %s9, %s389
      %p391 = pneg %p292
      %p392 = pneg %p289
      %p393 = scmp.lt.s32.totalorder %s27, 1
      %s394 = scalar_select %p393, %s27, 1
      %p395 = scmp.lt.s32.totalorder %s28, 0
      %s396 = scalar_select %p395, %s28, 0
      %s397 = smul.addr %s396, 32
      %s398 = smul.addr %s394, 32
      %s399 = sadd.s32 %s397, %s398
      %s400 = smul.addr %s399, 8
      %s401 = scalar_lea.vmem %s10, %s400
      %s402 = sadd.s32 %s28, %s29
      %p403 = scmp.lt.s32.totalorder %s27, 1
      %s404 = scalar_select %p403, %s27, 1
      %p405 = scmp.lt.s32.totalorder %s402, 0
      %s406 = scalar_select %p405, %s402, 0
      %s407 = sadd.s32 %s406, %s404
      %s408 = smul.addr %s407, 4
      %s409 = scalar_lea.vmem %s0, %s408
      %s410 = sadd.s32 %s28, %s29
      %s411 = sadd.s32 %s28, %s29
      %p412 = scmp.lt.s32.totalorder %s27, 1
      %s413 = scalar_select %p412, %s27, 1
      %p414 = scmp.lt.s32.totalorder %s411, 0
      %s415 = scalar_select %p414, %s411, 0
      %s416 = smul.addr %s413, 32
      %s417 = sadd.s32 %s415, %s416
      %s418 = smul.addr %s417, 8
      %s419 = scalar_lea.vmem %s9, %s418
      %s420 = sadd.s32 %s28, %s29
      %p421 = scmp.lt.s32.totalorder %s27, 1
      %s422 = scalar_select %p421, %s27, 1
      %p423 = scmp.lt.s32.totalorder %s28, 0
      %s424 = scalar_select %p423, %s28, 0
      %s425 = smul.addr %s424, 32
      %s426 = smul.addr %s422, 32
      %s427 = sadd.s32 %s425, %s426
      %s428 = smul.addr %s427, 8
      %s429 = scalar_lea.vmem %s10, %s428
      %v431 = vld [vmem:[%s409] sm:$0xf]
      %v432 = vpack.c.bf16 %v431, %v431
      %v433 = vld [vmem:[%s1] sm:$0xf]
      %v434 = vld [vmem:[%s1 + $0x4] sm:$0xf]
      %v435 = vld [vmem:[%s1 + $0x8] sm:$0xf]
      %v436 = vld [vmem:[%s1 + $0xc] sm:$0xf]
      %v437 = vld [vmem:[%s1 + $0x10] sm:$0xf]
      %v438 = vld [vmem:[%s1 + $0x14] sm:$0xf]
      %v439 = vld [vmem:[%s1 + $0x18] sm:$0xf]
      %v440 = vld [vmem:[%s1 + $0x1c] sm:$0xf]
      %v441 = vld [vmem:[%s2] sm:$0xff]
      %v442 = vld [vmem:[%s2 + $0x8] sm:$0xff]
      %v443 = vld [vmem:[%s2 + $0x10] sm:$0xff]
      %v444 = vld [vmem:[%s2 + $0x18] sm:$0xff]
      %v445 = vld [vmem:[%s2 + $0x20] sm:$0xff]
      %v446 = vld [vmem:[%s2 + $0x28] sm:$0xff]
      %v447 = vld [vmem:[%s2 + $0x30] sm:$0xff]
      %v448 = vld [vmem:[%s2 + $0x38] sm:$0xff]
      %450 = vset.pattern.permute.xlu0 0
      %451 = vperm.xlu0 %450, %v441
      %v452 = vpop.permute.xlu0 %451
      %455 = vset.pattern.permute.xlu0 0
      %456 = vperm.xlu0 %455, %v442
      %v457 = vpop.permute.xlu0 %456
      %460 = vset.pattern.permute.xlu0 0
      %461 = vperm.xlu0 %460, %v443
      %v462 = vpop.permute.xlu0 %461
      %465 = vset.pattern.permute.xlu0 0
      %466 = vperm.xlu0 %465, %v444
      %v467 = vpop.permute.xlu0 %466
      %470 = vset.pattern.permute.xlu0 0
      %471 = vperm.xlu0 %470, %v445
      %v472 = vpop.permute.xlu0 %471
      %475 = vset.pattern.permute.xlu0 0
      %476 = vperm.xlu0 %475, %v446
      %v477 = vpop.permute.xlu0 %476
      %480 = vset.pattern.permute.xlu0 0
      %481 = vperm.xlu0 %480, %v447
      %v482 = vpop.permute.xlu0 %481
      %485 = vset.pattern.permute.xlu0 0
      %486 = vperm.xlu0 %485, %v448
      %v487 = vpop.permute.xlu0 %486
      %v497 = vunpack.c.l.b16 %v433
      %v498 = vunpack.c.l.b16 %v434
      %v499 = vunpack.c.l.b16 %v435
      %v500 = vunpack.c.l.b16 %v436
      %v501 = vunpack.c.l.b16 %v437
      %v502 = vunpack.c.l.b16 %v438
      %v503 = vunpack.c.l.b16 %v439
      %v504 = vunpack.c.l.b16 %v440
      %v505 = vpack.c.b16 %v498, %v497
      %v506 = vpack.c.b16 %v500, %v499
      %v507 = vpack.c.b16 %v502, %v501
      %v508 = vpack.c.b16 %v504, %v503
      %vm509 = vcmask 31744
      %v511 = vsel %vm509, %v505, 0
      %v514 = vsel %vm509, %v506, 0
      %v517 = vsel %vm509, %v507, 0
      %v520 = vsel %vm509, %v508, 0
      %vm522 = vcmask 1041408
      %v524 = vsel %vm522, %v432, 0
      %526 = vmatprep.subr.bf16.mxu0 0
      %527 = vmatpush1.bf16.msra.mxu0 %v524
      %528 = vmatprep.subr.bf16.mxu0 0
      %529 = vmatpush1.bf16.msra.mxu0 0
      %530 = vmatprep.subr.bf16.mxu0 0
      %531 = vmatpush1.bf16.msra.mxu0 0
      %532 = vmatprep.subr.bf16.mxu0 0
      %533 = vmatpush1.bf16.msra.mxu0 0
      %534 = vmatprep.subr.bf16.mxu0 0
      %535 = vmatpush1.bf16.msra.mxu0 0
      %536 = vmatprep.subr.bf16.mxu0 0
      %537 = vmatpush1.bf16.msra.mxu0 0
      %538 = vmatprep.subr.bf16.mxu0 0
      %539 = vmatpush1.bf16.msra.mxu0 0
      %540 = vmatprep.subr.bf16.mxu0 0
      %541 = vmatpush1.bf16.msra.mxu0 0
      %542 = vmatprep.subr.bf16.mxu0 0
      %543 = vmatpush1.bf16.msra.mxu0 0
      %544 = vmatprep.subr.bf16.mxu0 0
      %545 = vmatpush1.bf16.msra.mxu0 0
      %546 = vmatprep.subr.bf16.mxu0 0
      %547 = vmatpush1.bf16.msra.mxu0 0
      %548 = vmatprep.subr.bf16.mxu0 0
      %549 = vmatpush1.bf16.msra.mxu0 0
      %550 = vmatprep.subr.bf16.mxu0 0
      %551 = vmatpush1.bf16.msra.mxu0 0
      %552 = vmatprep.subr.bf16.mxu0 0
      %553 = vmatpush1.bf16.msra.mxu0 0
      %554 = vmatprep.subr.bf16.mxu0 0
      %555 = vmatpush1.bf16.msra.mxu0 0
      %556 = vmatprep.subr.bf16.mxu0 0
      %557 = vmatpush1.bf16.msra.mxu0 0
      %558 = vmatprep.mubr.bf16.mxu0 0
      %559 = vmatmul.mubr.bf16.gmra.mrb[0].mxu0 %v511
      %v560 = vpop.f32.mrb[0].mxu0
      %v561 = vadd.f32 %v452, %v560
      %v562 = vpop.f32.mrb[0].mxu0
      %v563 = vpop.f32.mrb[0].mxu0
      %v564 = vadd.f32 %v457, %v563
      %v565 = vpop.f32.mrb[0].mxu0
      %566 = vmatprep.mubr.bf16.mxu0 0
      %567 = vmatmul.mubr.bf16.gmra.mrb[0].mxu0 %v514
      %v568 = vpop.f32.mrb[0].mxu0
      %v569 = vadd.f32 %v462, %v568
      %v570 = vpop.f32.mrb[0].mxu0
      %v571 = vpop.f32.mrb[0].mxu0
      %v572 = vadd.f32 %v467, %v571
      %v573 = vpop.f32.mrb[0].mxu0
      %574 = vmatprep.mubr.bf16.mxu0 0
      %575 = vmatmul.mubr.bf16.gmra.mrb[0].mxu0 %v517
      %v576 = vpop.f32.mrb[0].mxu0
      %v577 = vadd.f32 %v472, %v576
      %v578 = vpop.f32.mrb[0].mxu0
      %v579 = vpop.f32.mrb[0].mxu0
      %v580 = vadd.f32 %v477, %v579
      %v581 = vpop.f32.mrb[0].mxu0
      %582 = vmatprep.mubr.bf16.mxu0 0
      %583 = vmatmul.mubr.bf16.gmra.mrb[0].mxu0 %v520
      %v584 = vpop.f32.mrb[0].mxu0
      %v585 = vadd.f32 %v482, %v584
      %v586 = vpop.f32.mrb[0].mxu0
      %v587 = vpop.f32.mrb[0].mxu0
      %v588 = vadd.f32 %v487, %v587
      %v589 = vpop.f32.mrb[0].mxu0
      %590 = vdwg.mxu0
      %v591 = vmax.f32 %v561, 0.0
      %v592 = vmax.f32 %v564, 0.0
      %v593 = vmax.f32 %v569, 0.0
      %v594 = vmax.f32 %v572, 0.0
      %v595 = vmax.f32 %v577, 0.0
      %v596 = vmax.f32 %v580, 0.0
      %v597 = vmax.f32 %v585, 0.0
      %v598 = vmax.f32 %v588, 0.0
      %v599 = vpack.c.bf16 %v592, %v591
      %v600 = vpack.c.bf16 %v594, %v593
      %v601 = vpack.c.bf16 %v596, %v595
      %v602 = vpack.c.bf16 %v598, %v597
      %v603 = vld [vmem:[%s3] sm:$0xf]
      %v604 = vld [vmem:[%s3 + $0x4] sm:$0xf]
      %v605 = vld [vmem:[%s3 + $0x8] sm:$0xf]
      %v606 = vld [vmem:[%s3 + $0xc] sm:$0xf]
      %v607 = vld [vmem:[%s3 + $0x10] sm:$0xf]
      %v608 = vld [vmem:[%s3 + $0x14] sm:$0xf]
      %v609 = vld [vmem:[%s3 + $0x18] sm:$0xf]
      %v610 = vld [vmem:[%s3 + $0x1c] sm:$0xf]
      %v611 = vld [vmem:[%s3 + $0x20] sm:$0xf]
      %v612 = vld [vmem:[%s3 + $0x24] sm:$0xf]
      %v613 = vld [vmem:[%s3 + $0x28] sm:$0xf]
      %v614 = vld [vmem:[%s3 + $0x2c] sm:$0xf]
      %v615 = vld [vmem:[%s3 + $0x30] sm:$0xf]
      %v616 = vld [vmem:[%s3 + $0x34] sm:$0xf]
      %v617 = vld [vmem:[%s3 + $0x38] sm:$0xf]
      %v618 = vld [vmem:[%s3 + $0x3c] sm:$0xf]
      %v619 = vld [vmem:[%s4] sm:$0xff]
      %v620 = vld [vmem:[%s4 + $0x8] sm:$0xff]
      %v621 = vld [vmem:[%s4 + $0x10] sm:$0xff]
      %v622 = vld [vmem:[%s4 + $0x18] sm:$0xff]
      %v623 = vld [vmem:[%s4 + $0x20] sm:$0xff]
      %v624 = vld [vmem:[%s4 + $0x28] sm:$0xff]
      %v625 = vld [vmem:[%s4 + $0x30] sm:$0xff]
      %v626 = vld [vmem:[%s4 + $0x38] sm:$0xff]
      %v627 = vld [vmem:[%s4 + $0x40] sm:$0xff]
      %v628 = vld [vmem:[%s4 + $0x48] sm:$0xff]
      %v629 = vld [vmem:[%s4 + $0x50] sm:$0xff]
      %v630 = vld [vmem:[%s4 + $0x58] sm:$0xff]
      %v631 = vld [vmem:[%s4 + $0x60] sm:$0xff]
      %v632 = vld [vmem:[%s4 + $0x68] sm:$0xff]
      %v633 = vld [vmem:[%s4 + $0x70] sm:$0xff]
      %v634 = vld [vmem:[%s4 + $0x78] sm:$0xff]
      %636 = vset.pattern.permute.xlu0 0
      %637 = vperm.xlu0 %636, %v619
      %v638 = vpop.permute.xlu0 %637
      %641 = vset.pattern.permute.xlu0 0
      %642 = vperm.xlu0 %641, %v620
      %v643 = vpop.permute.xlu0 %642
      %646 = vset.pattern.permute.xlu0 0
      %647 = vperm.xlu0 %646, %v621
      %v648 = vpop.permute.xlu0 %647
      %651 = vset.pattern.permute.xlu0 0
      %652 = vperm.xlu0 %651, %v622
      %v653 = vpop.permute.xlu0 %652
      %656 = vset.pattern.permute.xlu0 0
      %657 = vperm.xlu0 %656, %v623
      %v658 = vpop.permute.xlu0 %657
      %661 = vset.pattern.permute.xlu0 0
      %662 = vperm.xlu0 %661, %v624
      %v663 = vpop.permute.xlu0 %662
      %666 = vset.pattern.permute.xlu0 0
      %667 = vperm.xlu0 %666, %v625
      %v668 = vpop.permute.xlu0 %667
      %671 = vset.pattern.permute.xlu0 0
      %672 = vperm.xlu0 %671, %v626
      %v673 = vpop.permute.xlu0 %672
      %676 = vset.pattern.permute.xlu0 0
      %677 = vperm.xlu0 %676, %v627
      %v678 = vpop.permute.xlu0 %677
      %681 = vset.pattern.permute.xlu0 0
      %682 = vperm.xlu0 %681, %v628
      %v683 = vpop.permute.xlu0 %682
      %686 = vset.pattern.permute.xlu0 0
      %687 = vperm.xlu0 %686, %v629
      %v688 = vpop.permute.xlu0 %687
      %691 = vset.pattern.permute.xlu0 0
      %692 = vperm.xlu0 %691, %v630
      %v693 = vpop.permute.xlu0 %692
      %696 = vset.pattern.permute.xlu0 0
      %697 = vperm.xlu0 %696, %v631
      %v698 = vpop.permute.xlu0 %697
      %701 = vset.pattern.permute.xlu0 0
      %702 = vperm.xlu0 %701, %v632
      %v703 = vpop.permute.xlu0 %702
      %706 = vset.pattern.permute.xlu0 0
      %707 = vperm.xlu0 %706, %v633
      %v708 = vpop.permute.xlu0 %707
      %711 = vset.pattern.permute.xlu0 0
      %712 = vperm.xlu0 %711, %v634
      %v713 = vpop.permute.xlu0 %712
      %v731 = vunpack.c.l.b16 %v603
      %v732 = vunpack.c.l.b16 %v604
      %v733 = vunpack.c.l.b16 %v605
      %v734 = vunpack.c.l.b16 %v606
      %v735 = vunpack.c.l.b16 %v607
      %v736 = vunpack.c.l.b16 %v608
      %v737 = vunpack.c.l.b16 %v609
      %v738 = vunpack.c.l.b16 %v610
      %v739 = vunpack.c.l.b16 %v611
      %v740 = vunpack.c.l.b16 %v612
      %v741 = vunpack.c.l.b16 %v613
      %v742 = vunpack.c.l.b16 %v614
      %v743 = vunpack.c.l.b16 %v615
      %v744 = vunpack.c.l.b16 %v616
      %v745 = vunpack.c.l.b16 %v617
      %v746 = vunpack.c.l.b16 %v618
      %v747 = vpack.c.b16 %v732, %v731
      %v748 = vpack.c.b16 %v734, %v733
      %v749 = vpack.c.b16 %v736, %v735
      %v750 = vpack.c.b16 %v738, %v737
      %v751 = vpack.c.b16 %v740, %v739
      %v752 = vpack.c.b16 %v742, %v741
      %v753 = vpack.c.b16 %v744, %v743
      %v754 = vpack.c.b16 %v746, %v745
      %vm755 = vcmask 523264
      %v757 = vsel %vm755, %v747, 0
      %v760 = vsel %vm755, %v748, 0
      %v763 = vsel %vm755, %v749, 0
      %v766 = vsel %vm755, %v750, 0
      %v769 = vsel %vm755, %v751, 0
      %v772 = vsel %vm755, %v752, 0
      %v775 = vsel %vm755, %v753, 0
      %v778 = vsel %vm755, %v754, 0
      %780 = vmatprep.subr.bf16.mxu0 0
      %781 = vmatpush1.bf16.msra.mxu0 %v599
      %782 = vmatprep.subr.bf16.mxu0 0
      %783 = vmatpush1.bf16.msra.mxu0 %v600
      %784 = vmatprep.subr.bf16.mxu0 0
      %785 = vmatpush1.bf16.msra.mxu0 %v601
      %786 = vmatprep.subr.bf16.mxu0 0
      %787 = vmatpush1.bf16.msra.mxu0 %v602
      %788 = vmatprep.subr.bf16.mxu0 0
      %789 = vmatpush1.bf16.msra.mxu0 0
      %790 = vmatprep.subr.bf16.mxu0 0
      %791 = vmatpush1.bf16.msra.mxu0 0
      %792 = vmatprep.subr.bf16.mxu0 0
      %793 = vmatpush1.bf16.msra.mxu0 0
      %794 = vmatprep.subr.bf16.mxu0 0
      %795 = vmatpush1.bf16.msra.mxu0 0
      %796 = vmatprep.subr.bf16.mxu0 0
      %797 = vmatpush1.bf16.msra.mxu0 0
      %798 = vmatprep.subr.bf16.mxu0 0
      %799 = vmatpush1.bf16.msra.mxu0 0
      %800 = vmatprep.subr.bf16.mxu0 0
      %801 = vmatpush1.bf16.msra.mxu0 0
      %802 = vmatprep.subr.bf16.mxu0 0
      %803 = vmatpush1.bf16.msra.mxu0 0
      %804 = vmatprep.subr.bf16.mxu0 0
      %805 = vmatpush1.bf16.msra.mxu0 0
      %806 = vmatprep.subr.bf16.mxu0 0
      %807 = vmatpush1.bf16.msra.mxu0 0
      %808 = vmatprep.subr.bf16.mxu0 0
      %809 = vmatpush1.bf16.msra.mxu0 0
      %810 = vmatprep.subr.bf16.mxu0 0
      %811 = vmatpush1.bf16.msra.mxu0 0
      %812 = vmatprep.mubr.bf16.mxu0 0
      %813 = vmatmul.mubr.bf16.gmra.mrb[0].mxu0 %v757
      %v814 = vpop.f32.mrb[0].mxu0
      %v815 = vadd.f32 %v638, %v814
      %v816 = vpop.f32.mrb[0].mxu0
      %v817 = vpop.f32.mrb[0].mxu0
      %v818 = vadd.f32 %v643, %v817
      %v819 = vpop.f32.mrb[0].mxu0
      %820 = vmatprep.mubr.bf16.mxu0 0
      %821 = vmatmul.mubr.bf16.gmra.mrb[0].mxu0 %v760
      %v822 = vpop.f32.mrb[0].mxu0
      %v823 = vadd.f32 %v648, %v822
      %v824 = vpop.f32.mrb[0].mxu0
      %v825 = vpop.f32.mrb[0].mxu0
      %v826 = vadd.f32 %v653, %v825
      %v827 = vpop.f32.mrb[0].mxu0
      %828 = vmatprep.mubr.bf16.mxu0 0
      %829 = vmatmul.mubr.bf16.gmra.mrb[0].mxu0 %v763
      %v830 = vpop.f32.mrb[0].mxu0
      %v831 = vadd.f32 %v658, %v830
      %v832 = vpop.f32.mrb[0].mxu0
      %v833 = vpop.f32.mrb[0].mxu0
      %v834 = vadd.f32 %v663, %v833
      %v835 = vpop.f32.mrb[0].mxu0
      %836 = vmatprep.mubr.bf16.mxu0 0
      %837 = vmatmul.mubr.bf16.gmra.mrb[0].mxu0 %v766
      %v838 = vpop.f32.mrb[0].mxu0
      %v839 = vadd.f32 %v668, %v838
      %v840 = vpop.f32.mrb[0].mxu0
      %v841 = vpop.f32.mrb[0].mxu0
      %v842 = vadd.f32 %v673, %v841
      %v843 = vpop.f32.mrb[0].mxu0
      %844 = vmatprep.mubr.bf16.mxu0 0
      %845 = vmatmul.mubr.bf16.gmra.mrb[0].mxu0 %v769
      %v846 = vpop.f32.mrb[0].mxu0
      %v847 = vadd.f32 %v678, %v846
      %v848 = vpop.f32.mrb[0].mxu0
      %v849 = vpop.f32.mrb[0].mxu0
      %v850 = vadd.f32 %v683, %v849
      %v851 = vpop.f32.mrb[0].mxu0
      %852 = vmatprep.mubr.bf16.mxu0 0
      %853 = vmatmul.mubr.bf16.gmra.mrb[0].mxu0 %v772
      %v854 = vpop.f32.mrb[0].mxu0
      %v855 = vadd.f32 %v688, %v854
      %v856 = vpop.f32.mrb[0].mxu0
      %v857 = vpop.f32.mrb[0].mxu0
      %v858 = vadd.f32 %v693, %v857
      %v859 = vpop.f32.mrb[0].mxu0
      %860 = vmatprep.mubr.bf16.mxu0 0
      %861 = vmatmul.mubr.bf16.gmra.mrb[0].mxu0 %v775
      %v862 = vpop.f32.mrb[0].mxu0
      %v863 = vadd.f32 %v698, %v862
      %v864 = vpop.f32.mrb[0].mxu0
      %v865 = vpop.f32.mrb[0].mxu0
      %v866 = vadd.f32 %v703, %v865
      %v867 = vpop.f32.mrb[0].mxu0
      %868 = vmatprep.mubr.bf16.mxu0 0
      %869 = vmatmul.mubr.bf16.gmra.mrb[0].mxu0 %v778
      %v870 = vpop.f32.mrb[0].mxu0
      %v871 = vadd.f32 %v708, %v870
      %v872 = vpop.f32.mrb[0].mxu0
      %v873 = vpop.f32.mrb[0].mxu0
      %v874 = vadd.f32 %v713, %v873
      %v875 = vpop.f32.mrb[0].mxu0
      %876 = vdwg.mxu0
      %v877 = vmax.f32 %v815, 0.0
      %v878 = vmax.f32 %v818, 0.0
      %v879 = vmax.f32 %v823, 0.0
      %v880 = vmax.f32 %v826, 0.0
      %v881 = vmax.f32 %v831, 0.0
      %v882 = vmax.f32 %v834, 0.0
      %v883 = vmax.f32 %v839, 0.0
      %v884 = vmax.f32 %v842, 0.0
      %v885 = vmax.f32 %v847, 0.0
      %v886 = vmax.f32 %v850, 0.0
      %v887 = vmax.f32 %v855, 0.0
      %v888 = vmax.f32 %v858, 0.0
      %v889 = vmax.f32 %v863, 0.0
      %v890 = vmax.f32 %v866, 0.0
      %v891 = vmax.f32 %v871, 0.0
      %v892 = vmax.f32 %v874, 0.0
      %v893 = vpack.c.bf16 %v878, %v877
      %v894 = vpack.c.bf16 %v880, %v879
      %v895 = vpack.c.bf16 %v882, %v881
      %v896 = vpack.c.bf16 %v884, %v883
      %v897 = vpack.c.bf16 %v886, %v885
      %v898 = vpack.c.bf16 %v888, %v887
      %v899 = vpack.c.bf16 %v890, %v889
      %v900 = vpack.c.bf16 %v892, %v891
      %v901 = vld [vmem:[%s5] sm:$0xf]
      %v902 = vld [vmem:[%s5 + $0x4] sm:$0xf]
      %v903 = vld [vmem:[%s5 + $0x8] sm:$0xf]
      %v904 = vld [vmem:[%s5 + $0xc] sm:$0xf]
      %v905 = vld [vmem:[%s5 + $0x10] sm:$0xf]
      %v906 = vld [vmem:[%s5 + $0x14] sm:$0xf]
      %v907 = vld [vmem:[%s5 + $0x18] sm:$0xf]
      %v908 = vld [vmem:[%s5 + $0x1c] sm:$0xf]
      %v909 = vld [vmem:[%s5 + $0x20] sm:$0xf]
      %v910 = vld [vmem:[%s5 + $0x24] sm:$0xf]
      %v911 = vld [vmem:[%s5 + $0x28] sm:$0xf]
      %v912 = vld [vmem:[%s5 + $0x2c] sm:$0xf]
      %v913 = vld [vmem:[%s5 + $0x30] sm:$0xf]
      %v914 = vld [vmem:[%s5 + $0x34] sm:$0xf]
      %v915 = vld [vmem:[%s5 + $0x38] sm:$0xf]
      %v916 = vld [vmem:[%s5 + $0x3c] sm:$0xf]
      %v917 = vld [vmem:[%s5 + $0x40] sm:$0xf]
      %v918 = vld [vmem:[%s5 + $0x44] sm:$0xf]
      %v919 = vld [vmem:[%s5 + $0x48] sm:$0xf]
      %v920 = vld [vmem:[%s5 + $0x4c] sm:$0xf]
      %v921 = vld [vmem:[%s5 + $0x50] sm:$0xf]
      %v922 = vld [vmem:[%s5 + $0x54] sm:$0xf]
      %v923 = vld [vmem:[%s5 + $0x58] sm:$0xf]
      %v924 = vld [vmem:[%s5 + $0x5c] sm:$0xf]
      %v925 = vld [vmem:[%s5 + $0x60] sm:$0xf]
      %v926 = vld [vmem:[%s5 + $0x64] sm:$0xf]
      %v927 = vld [vmem:[%s5 + $0x68] sm:$0xf]
      %v928 = vld [vmem:[%s5 + $0x6c] sm:$0xf]
      %v929 = vld [vmem:[%s5 + $0x70] sm:$0xf]
      %v930 = vld [vmem:[%s5 + $0x74] sm:$0xf]
      %v931 = vld [vmem:[%s5 + $0x78] sm:$0xf]
      %v932 = vld [vmem:[%s5 + $0x7c] sm:$0xf]
      %v933 = vld [vmem:[%s6] sm:$0xff]
      %v934 = vld [vmem:[%s6 + $0x8] sm:$0xff]
      %v935 = vld [vmem:[%s6 + $0x10] sm:$0xff]
      %v936 = vld [vmem:[%s6 + $0x18] sm:$0xff]
      %v937 = vld [vmem:[%s6 + $0x20] sm:$0xff]
      %v938 = vld [vmem:[%s6 + $0x28] sm:$0xff]
      %v939 = vld [vmem:[%s6 + $0x30] sm:$0xff]
      %v940 = vld [vmem:[%s6 + $0x38] sm:$0xff]
      %v941 = vld [vmem:[%s6 + $0x40] sm:$0xff]
      %v942 = vld [vmem:[%s6 + $0x48] sm:$0xff]
      %v943 = vld [vmem:[%s6 + $0x50] sm:$0xff]
      %v944 = vld [vmem:[%s6 + $0x58] sm:$0xff]
      %v945 = vld [vmem:[%s6 + $0x60] sm:$0xff]
      %v946 = vld [vmem:[%s6 + $0x68] sm:$0xff]
      %v947 = vld [vmem:[%s6 + $0x70] sm:$0xff]
      %v948 = vld [vmem:[%s6 + $0x78] sm:$0xff]
      %v949 = vld [vmem:[%s6 + $0x80] sm:$0xff]
      %v950 = vld [vmem:[%s6 + $0x88] sm:$0xff]
      %v951 = vld [vmem:[%s6 + $0x90] sm:$0xff]
      %v952 = vld [vmem:[%s6 + $0x98] sm:$0xff]
      %v953 = vld [vmem:[%s6 + $0xa0] sm:$0xff]
      %v954 = vld [vmem:[%s6 + $0xa8] sm:$0xff]
      %v955 = vld [vmem:[%s6 + $0xb0] sm:$0xff]
      %v956 = vld [vmem:[%s6 + $0xb8] sm:$0xff]
      %v957 = vld [vmem:[%s6 + $0xc0] sm:$0xff]
      %v958 = vld [vmem:[%s6 + $0xc8] sm:$0xff]
      %v959 = vld [vmem:[%s6 + $0xd0] sm:$0xff]
      %v960 = vld [vmem:[%s6 + $0xd8] sm:$0xff]
      %v961 = vld [vmem:[%s6 + $0xe0] sm:$0xff]
      %v962 = vld [vmem:[%s6 + $0xe8] sm:$0xff]
      %v963 = vld [vmem:[%s6 + $0xf0] sm:$0xff]
      %v964 = vld [vmem:[%s6 + $0xf8] sm:$0xff]
      %966 = vset.pattern.permute.xlu0 0
      %967 = vperm.xlu0 %966, %v933
      %v968 = vpop.permute.xlu0 %967
      %971 = vset.pattern.permute.xlu0 0
      %972 = vperm.xlu0 %971, %v934
      %v973 = vpop.permute.xlu0 %972
      %976 = vset.pattern.permute.xlu0 0
      %977 = vperm.xlu0 %976, %v935
      %v978 = vpop.permute.xlu0 %977
      %981 = vset.pattern.permute.xlu0 0
      %982 = vperm.xlu0 %981, %v936
      %v983 = vpop.permute.xlu0 %982
      %986 = vset.pattern.permute.xlu0 0
      %987 = vperm.xlu0 %986, %v937
      %v988 = vpop.permute.xlu0 %987
      %991 = vset.pattern.permute.xlu0 0
      %992 = vperm.xlu0 %991, %v938
      %v993 = vpop.permute.xlu0 %992
      %996 = vset.pattern.permute.xlu0 0
      %997 = vperm.xlu0 %996, %v939
      %v998 = vpop.permute.xlu0 %997
      %1001 = vset.pattern.permute.xlu0 0
      %1002 = vperm.xlu0 %1001, %v940
      %v1003 = vpop.permute.xlu0 %1002
      %1006 = vset.pattern.permute.xlu0 0
      %1007 = vperm.xlu0 %1006, %v941
      %v1008 = vpop.permute.xlu0 %1007
      %1011 = vset.pattern.permute.xlu0 0
      %1012 = vperm.xlu0 %1011, %v942
      %v1013 = vpop.permute.xlu0 %1012
      %1016 = vset.pattern.permute.xlu0 0
      %1017 = vperm.xlu0 %1016, %v943
      %v1018 = vpop.permute.xlu0 %1017
      %1021 = vset.pattern.permute.xlu0 0
      %1022 = vperm.xlu0 %1021, %v944
      %v1023 = vpop.permute.xlu0 %1022
      %1026 = vset.pattern.permute.xlu0 0
      %1027 = vperm.xlu0 %1026, %v945
      %v1028 = vpop.permute.xlu0 %1027
      %1031 = vset.pattern.permute.xlu0 0
      %1032 = vperm.xlu0 %1031, %v946
      %v1033 = vpop.permute.xlu0 %1032
      %1036 = vset.pattern.permute.xlu0 0
      %1037 = vperm.xlu0 %1036, %v947
      %v1038 = vpop.permute.xlu0 %1037
      %1041 = vset.pattern.permute.xlu0 0
      %1042 = vperm.xlu0 %1041, %v948
      %v1043 = vpop.permute.xlu0 %1042
      %1046 = vset.pattern.permute.xlu0 0
      %1047 = vperm.xlu0 %1046, %v949
      %v1048 = vpop.permute.xlu0 %1047
      %1051 = vset.pattern.permute.xlu0 0
      %1052 = vperm.xlu0 %1051, %v950
      %v1053 = vpop.permute.xlu0 %1052
      %1056 = vset.pattern.permute.xlu0 0
      %1057 = vperm.xlu0 %1056, %v951
      %v1058 = vpop.permute.xlu0 %1057
      %1061 = vset.pattern.permute.xlu0 0
      %1062 = vperm.xlu0 %1061, %v952
      %v1063 = vpop.permute.xlu0 %1062
      %1066 = vset.pattern.permute.xlu0 0
      %1067 = vperm.xlu0 %1066, %v953
      %v1068 = vpop.permute.xlu0 %1067
      %1071 = vset.pattern.permute.xlu0 0
      %1072 = vperm.xlu0 %1071, %v954
      %v1073 = vpop.permute.xlu0 %1072
      %1076 = vset.pattern.permute.xlu0 0
      %1077 = vperm.xlu0 %1076, %v955
      %v1078 = vpop.permute.xlu0 %1077
      %1081 = vset.pattern.permute.xlu0 0
      %1082 = vperm.xlu0 %1081, %v956
      %v1083 = vpop.permute.xlu0 %1082
      %1086 = vset.pattern.permute.xlu0 0
      %1087 = vperm.xlu0 %1086, %v957
      %v1088 = vpop.permute.xlu0 %1087
      %1091 = vset.pattern.permute.xlu0 0
      %1092 = vperm.xlu0 %1091, %v958
      %v1093 = vpop.permute.xlu0 %1092
      %1096 = vset.pattern.permute.xlu0 0
      %1097 = vperm.xlu0 %1096, %v959
      %v1098 = vpop.permute.xlu0 %1097
      %1101 = vset.pattern.permute.xlu0 0
      %1102 = vperm.xlu0 %1101, %v960
      %v1103 = vpop.permute.xlu0 %1102
      %1106 = vset.pattern.permute.xlu0 0
      %1107 = vperm.xlu0 %1106, %v961
      %v1108 = vpop.permute.xlu0 %1107
      %1111 = vset.pattern.permute.xlu0 0
      %1112 = vperm.xlu0 %1111, %v962
      %v1113 = vpop.permute.xlu0 %1112
      %1116 = vset.pattern.permute.xlu0 0
      %1117 = vperm.xlu0 %1116, %v963
      %v1118 = vpop.permute.xlu0 %1117
      %1121 = vset.pattern.permute.xlu0 0
      %1122 = vperm.xlu0 %1121, %v964
      %v1123 = vpop.permute.xlu0 %1122
      %v1157 = vunpack.c.l.b16 %v901
      %v1158 = vunpack.c.l.b16 %v902
      %v1159 = vunpack.c.l.b16 %v903
      %v1160 = vunpack.c.l.b16 %v904
      %v1161 = vunpack.c.l.b16 %v905
      %v1162 = vunpack.c.l.b16 %v906
      %v1163 = vunpack.c.l.b16 %v907
      %v1164 = vunpack.c.l.b16 %v908
      %v1165 = vunpack.c.l.b16 %v909
      %v1166 = vunpack.c.l.b16 %v910
      %v1167 = vunpack.c.l.b16 %v911
      %v1168 = vunpack.c.l.b16 %v912
      %v1169 = vunpack.c.l.b16 %v913
      %v1170 = vunpack.c.l.b16 %v914
      %v1171 = vunpack.c.l.b16 %v915
      %v1172 = vunpack.c.l.b16 %v916
      %v1173 = vunpack.c.l.b16 %v917
      %v1174 = vunpack.c.l.b16 %v918
      %v1175 = vunpack.c.l.b16 %v919
      %v1176 = vunpack.c.l.b16 %v920
      %v1177 = vunpack.c.l.b16 %v921
      %v1178 = vunpack.c.l.b16 %v922
      %v1179 = vunpack.c.l.b16 %v923
      %v1180 = vunpack.c.l.b16 %v924
      %v1181 = vunpack.c.l.b16 %v925
      %v1182 = vunpack.c.l.b16 %v926
      %v1183 = vunpack.c.l.b16 %v927
      %v1184 = vunpack.c.l.b16 %v928
      %v1185 = vunpack.c.l.b16 %v929
      %v1186 = vunpack.c.l.b16 %v930
      %v1187 = vunpack.c.l.b16 %v931
      %v1188 = vunpack.c.l.b16 %v932
      %v1189 = vpack.c.b16 %v1158, %v1157
      %v1190 = vpack.c.b16 %v1160, %v1159
      %v1191 = vpack.c.b16 %v1162, %v1161
      %v1192 = vpack.c.b16 %v1164, %v1163
      %v1193 = vpack.c.b16 %v1166, %v1165
      %v1194 = vpack.c.b16 %v1168, %v1167
      %v1195 = vpack.c.b16 %v1170, %v1169
      %v1196 = vpack.c.b16 %v1172, %v1171
      %v1197 = vpack.c.b16 %v1174, %v1173
      %v1198 = vpack.c.b16 %v1176, %v1175
      %v1199 = vpack.c.b16 %v1178, %v1177
      %v1200 = vpack.c.b16 %v1180, %v1179
      %v1201 = vpack.c.b16 %v1182, %v1181
      %v1202 = vpack.c.b16 %v1184, %v1183
      %v1203 = vpack.c.b16 %v1186, %v1185
      %v1204 = vpack.c.b16 %v1188, %v1187
      %1221 = vmatprep.subr.bf16.mxu0 0
      %1222 = vmatpush1.bf16.msra.mxu0 %v893
      %1223 = vmatprep.subr.bf16.mxu0 0
      %1224 = vmatpush1.bf16.msra.mxu0 %v894
      %1225 = vmatprep.subr.bf16.mxu0 0
      %1226 = vmatpush1.bf16.msra.mxu0 %v895
      %1227 = vmatprep.subr.bf16.mxu0 0
      %1228 = vmatpush1.bf16.msra.mxu0 %v896
      %1229 = vmatprep.subr.bf16.mxu0 0
      %1230 = vmatpush1.bf16.msra.mxu0 %v897
      %1231 = vmatprep.subr.bf16.mxu0 0
      %1232 = vmatpush1.bf16.msra.mxu0 %v898
      %1233 = vmatprep.subr.bf16.mxu0 0
      %1234 = vmatpush1.bf16.msra.mxu0 %v899
      %1235 = vmatprep.subr.bf16.mxu0 0
      %1236 = vmatpush1.bf16.msra.mxu0 %v900
      %1237 = vmatprep.subr.bf16.mxu0 0
      %1238 = vmatpush1.bf16.msra.mxu0 0
      %1239 = vmatprep.subr.bf16.mxu0 0
      %1240 = vmatpush1.bf16.msra.mxu0 0
      %1241 = vmatprep.subr.bf16.mxu0 0
      %1242 = vmatpush1.bf16.msra.mxu0 0
      %1243 = vmatprep.subr.bf16.mxu0 0
      %1244 = vmatpush1.bf16.msra.mxu0 0
      %1245 = vmatprep.subr.bf16.mxu0 0
      %1246 = vmatpush1.bf16.msra.mxu0 0
      %1247 = vmatprep.subr.bf16.mxu0 0
      %1248 = vmatpush1.bf16.msra.mxu0 0
      %1249 = vmatprep.subr.bf16.mxu0 0
      %1250 = vmatpush1.bf16.msra.mxu0 0
      %1251 = vmatprep.subr.bf16.mxu0 0
      %1252 = vmatpush1.bf16.msra.mxu0 0
      %1253 = vmatprep.mubr.bf16.mxu0 0
      %1254 = vmatmul.mubr.bf16.gmra.mrb[0].mxu0 %v1189
      %v1255 = vpop.f32.mrb[0].mxu0
      %v1256 = vadd.f32 %v968, %v1255
      %v1257 = vpop.f32.mrb[0].mxu0
      %v1258 = vpop.f32.mrb[0].mxu0
      %v1259 = vadd.f32 %v973, %v1258
      %v1260 = vpop.f32.mrb[0].mxu0
      %1261 = vmatprep.mubr.bf16.mxu0 0
      %1262 = vmatmul.mubr.bf16.gmra.mrb[0].mxu0 %v1190
      %v1263 = vpop.f32.mrb[0].mxu0
      %v1264 = vadd.f32 %v978, %v1263
      %v1265 = vpop.f32.mrb[0].mxu0
      %v1266 = vpop.f32.mrb[0].mxu0
      %v1267 = vadd.f32 %v983, %v1266
      %v1268 = vpop.f32.mrb[0].mxu0
      %1269 = vmatprep.mubr.bf16.mxu0 0
      %1270 = vmatmul.mubr.bf16.gmra.mrb[0].mxu0 %v1191
      %v1271 = vpop.f32.mrb[0].mxu0
      %v1272 = vadd.f32 %v988, %v1271
      %v1273 = vpop.f32.mrb[0].mxu0
      %v1274 = vpop.f32.mrb[0].mxu0
      %v1275 = vadd.f32 %v993, %v1274
      %v1276 = vpop.f32.mrb[0].mxu0
      %1277 = vmatprep.mubr.bf16.mxu0 0
      %1278 = vmatmul.mubr.bf16.gmra.mrb[0].mxu0 %v1192
      %v1279 = vpop.f32.mrb[0].mxu0
      %v1280 = vadd.f32 %v998, %v1279
      %v1281 = vpop.f32.mrb[0].mxu0
      %v1282 = vpop.f32.mrb[0].mxu0
      %v1283 = vadd.f32 %v1003, %v1282
      %v1284 = vpop.f32.mrb[0].mxu0
      %1285 = vmatprep.mubr.bf16.mxu0 0
      %1286 = vmatmul.mubr.bf16.gmra.mrb[0].mxu0 %v1193
      %v1287 = vpop.f32.mrb[0].mxu0
      %v1288 = vadd.f32 %v1008, %v1287
      %v1289 = vpop.f32.mrb[0].mxu0
      %v1290 = vpop.f32.mrb[0].mxu0
      %v1291 = vadd.f32 %v1013, %v1290
      %v1292 = vpop.f32.mrb[0].mxu0
      %1293 = vmatprep.mubr.bf16.mxu0 0
      %1294 = vmatmul.mubr.bf16.gmra.mrb[0].mxu0 %v1194
      %v1295 = vpop.f32.mrb[0].mxu0
      %v1296 = vadd.f32 %v1018, %v1295
      %v1297 = vpop.f32.mrb[0].mxu0
      %v1298 = vpop.f32.mrb[0].mxu0
      %v1299 = vadd.f32 %v1023, %v1298
      %v1300 = vpop.f32.mrb[0].mxu0
      %1301 = vmatprep.mubr.bf16.mxu0 0
      %1302 = vmatmul.mubr.bf16.gmra.mrb[0].mxu0 %v1195
      %v1303 = vpop.f32.mrb[0].mxu0
      %v1304 = vadd.f32 %v1028, %v1303
      %v1305 = vpop.f32.mrb[0].mxu0
      %v1306 = vpop.f32.mrb[0].mxu0
      %v1307 = vadd.f32 %v1033, %v1306
      %v1308 = vpop.f32.mrb[0].mxu0
      %1309 = vmatprep.mubr.bf16.mxu0 0
      %1310 = vmatmul.mubr.bf16.gmra.mrb[0].mxu0 %v1196
      %v1311 = vpop.f32.mrb[0].mxu0
      %v1312 = vadd.f32 %v1038, %v1311
      %v1313 = vpop.f32.mrb[0].mxu0
      %v1314 = vpop.f32.mrb[0].mxu0
      %v1315 = vadd.f32 %v1043, %v1314
      %v1316 = vpop.f32.mrb[0].mxu0
      %1317 = vmatprep.mubr.bf16.mxu0 0
      %1318 = vmatmul.mubr.bf16.gmra.mrb[0].mxu0 %v1197
      %v1319 = vpop.f32.mrb[0].mxu0
      %v1320 = vadd.f32 %v1048, %v1319
      %v1321 = vpop.f32.mrb[0].mxu0
      %v1322 = vpop.f32.mrb[0].mxu0
      %v1323 = vadd.f32 %v1053, %v1322
      %v1324 = vpop.f32.mrb[0].mxu0
      %1325 = vmatprep.mubr.bf16.mxu0 0
      %1326 = vmatmul.mubr.bf16.gmra.mrb[0].mxu0 %v1198
      %v1327 = vpop.f32.mrb[0].mxu0
      %v1328 = vadd.f32 %v1058, %v1327
      %v1329 = vpop.f32.mrb[0].mxu0
      %v1330 = vpop.f32.mrb[0].mxu0
      %v1331 = vadd.f32 %v1063, %v1330
      %v1332 = vpop.f32.mrb[0].mxu0
      %1333 = vmatprep.mubr.bf16.mxu0 0
      %1334 = vmatmul.mubr.bf16.gmra.mrb[0].mxu0 %v1199
      %v1335 = vpop.f32.mrb[0].mxu0
      %v1336 = vadd.f32 %v1068, %v1335
      %v1337 = vpop.f32.mrb[0].mxu0
      %v1338 = vpop.f32.mrb[0].mxu0
      %v1339 = vadd.f32 %v1073, %v1338
      %v1340 = vpop.f32.mrb[0].mxu0
      %1341 = vmatprep.mubr.bf16.mxu0 0
      %1342 = vmatmul.mubr.bf16.gmra.mrb[0].mxu0 %v1200
      %v1343 = vpop.f32.mrb[0].mxu0
      %v1344 = vadd.f32 %v1078, %v1343
      %v1345 = vpop.f32.mrb[0].mxu0
      %v1346 = vpop.f32.mrb[0].mxu0
      %v1347 = vadd.f32 %v1083, %v1346
      %v1348 = vpop.f32.mrb[0].mxu0
      %1349 = vmatprep.mubr.bf16.mxu0 0
      %1350 = vmatmul.mubr.bf16.gmra.mrb[0].mxu0 %v1201
      %v1351 = vpop.f32.mrb[0].mxu0
      %v1352 = vadd.f32 %v1088, %v1351
      %v1353 = vpop.f32.mrb[0].mxu0
      %v1354 = vpop.f32.mrb[0].mxu0
      %v1355 = vadd.f32 %v1093, %v1354
      %v1356 = vpop.f32.mrb[0].mxu0
      %1357 = vmatprep.mubr.bf16.mxu0 0
      %1358 = vmatmul.mubr.bf16.gmra.mrb[0].mxu0 %v1202
      %v1359 = vpop.f32.mrb[0].mxu0
      %v1360 = vadd.f32 %v1098, %v1359
      %v1361 = vpop.f32.mrb[0].mxu0
      %v1362 = vpop.f32.mrb[0].mxu0
      %v1363 = vadd.f32 %v1103, %v1362
      %v1364 = vpop.f32.mrb[0].mxu0
      %1365 = vmatprep.mubr.bf16.mxu0 0
      %1366 = vmatmul.mubr.bf16.gmra.mrb[0].mxu0 %v1203
      %v1367 = vpop.f32.mrb[0].mxu0
      %v1368 = vadd.f32 %v1108, %v1367
      %v1369 = vpop.f32.mrb[0].mxu0
      %v1370 = vpop.f32.mrb[0].mxu0
      %v1371 = vadd.f32 %v1113, %v1370
      %v1372 = vpop.f32.mrb[0].mxu0
      %1373 = vmatprep.mubr.bf16.mxu0 0
      %1374 = vmatmul.mubr.bf16.gmra.mrb[0].mxu0 %v1204
      %v1375 = vpop.f32.mrb[0].mxu0
      %v1376 = vadd.f32 %v1118, %v1375
      %v1377 = vpop.f32.mrb[0].mxu0
      %v1378 = vpop.f32.mrb[0].mxu0
      %v1379 = vadd.f32 %v1123, %v1378
      %v1380 = vpop.f32.mrb[0].mxu0
      %1381 = vdwg.mxu0
      %v1382 = vmax.f32 %v1256, 0.0
      %v1383 = vmax.f32 %v1259, 0.0
      %v1384 = vmax.f32 %v1264, 0.0
      %v1385 = vmax.f32 %v1267, 0.0
      %v1386 = vmax.f32 %v1272, 0.0
      %v1387 = vmax.f32 %v1275, 0.0
      %v1388 = vmax.f32 %v1280, 0.0
      %v1389 = vmax.f32 %v1283, 0.0
      %v1390 = vmax.f32 %v1288, 0.0
      %v1391 = vmax.f32 %v1291, 0.0
      %v1392 = vmax.f32 %v1296, 0.0
      %v1393 = vmax.f32 %v1299, 0.0
      %v1394 = vmax.f32 %v1304, 0.0
      %v1395 = vmax.f32 %v1307, 0.0
      %v1396 = vmax.f32 %v1312, 0.0
      %v1397 = vmax.f32 %v1315, 0.0
      %v1398 = vmax.f32 %v1320, 0.0
      %v1399 = vmax.f32 %v1323, 0.0
      %v1400 = vmax.f32 %v1328, 0.0
      %v1401 = vmax.f32 %v1331, 0.0
      %v1402 = vmax.f32 %v1336, 0.0
      %v1403 = vmax.f32 %v1339, 0.0
      %v1404 = vmax.f32 %v1344, 0.0
      %v1405 = vmax.f32 %v1347, 0.0
      %v1406 = vmax.f32 %v1352, 0.0
      %v1407 = vmax.f32 %v1355, 0.0
      %v1408 = vmax.f32 %v1360, 0.0
      %v1409 = vmax.f32 %v1363, 0.0
      %v1410 = vmax.f32 %v1368, 0.0
      %v1411 = vmax.f32 %v1371, 0.0
      %v1412 = vmax.f32 %v1376, 0.0
      %v1413 = vmax.f32 %v1379, 0.0
      %v1414 = vpack.c.bf16 %v1383, %v1382
      %v1415 = vpack.c.bf16 %v1385, %v1384
      %v1416 = vpack.c.bf16 %v1387, %v1386
      %v1417 = vpack.c.bf16 %v1389, %v1388
      %v1418 = vpack.c.bf16 %v1391, %v1390
      %v1419 = vpack.c.bf16 %v1393, %v1392
      %v1420 = vpack.c.bf16 %v1395, %v1394
      %v1421 = vpack.c.bf16 %v1397, %v1396
      %v1422 = vpack.c.bf16 %v1399, %v1398
      %v1423 = vpack.c.bf16 %v1401, %v1400
      %v1424 = vpack.c.bf16 %v1403, %v1402
      %v1425 = vpack.c.bf16 %v1405, %v1404
      %v1426 = vpack.c.bf16 %v1407, %v1406
      %v1427 = vpack.c.bf16 %v1409, %v1408
      %v1428 = vpack.c.bf16 %v1411, %v1410
      %v1429 = vpack.c.bf16 %v1413, %v1412
      %v1430 = vld [vmem:[%s7] sm:$0xff]
      %v1431 = vld [vmem:[%s7 + $0x8] sm:$0xff]
      %v1432 = vld [vmem:[%s7 + $0x10] sm:$0xff]
      %v1433 = vld [vmem:[%s7 + $0x18] sm:$0xff]
      %v1434 = vld [vmem:[%s7 + $0x20] sm:$0xff]
      %v1435 = vld [vmem:[%s7 + $0x28] sm:$0xff]
      %v1436 = vld [vmem:[%s7 + $0x30] sm:$0xff]
      %v1437 = vld [vmem:[%s7 + $0x38] sm:$0xff]
      %v1438 = vld [vmem:[%s7 + $0x40] sm:$0xff]
      %v1439 = vld [vmem:[%s7 + $0x48] sm:$0xff]
      %v1440 = vld [vmem:[%s7 + $0x50] sm:$0xff]
      %v1441 = vld [vmem:[%s7 + $0x58] sm:$0xff]
      %v1442 = vld [vmem:[%s7 + $0x60] sm:$0xff]
      %v1443 = vld [vmem:[%s7 + $0x68] sm:$0xff]
      %v1444 = vld [vmem:[%s7 + $0x70] sm:$0xff]
      %v1445 = vld [vmem:[%s7 + $0x78] sm:$0xff]
      %v1446 = vld [vmem:[%s7 + $0x80] sm:$0xff]
      %v1447 = vld [vmem:[%s7 + $0x88] sm:$0xff]
      %v1448 = vld [vmem:[%s7 + $0x90] sm:$0xff]
      %v1449 = vld [vmem:[%s7 + $0x98] sm:$0xff]
      %v1450 = vld [vmem:[%s7 + $0xa0] sm:$0xff]
      %v1451 = vld [vmem:[%s7 + $0xa8] sm:$0xff]
      %v1452 = vld [vmem:[%s7 + $0xb0] sm:$0xff]
      %v1453 = vld [vmem:[%s7 + $0xb8] sm:$0xff]
      %v1454 = vld [vmem:[%s7 + $0xc0] sm:$0xff]
      %v1455 = vld [vmem:[%s7 + $0xc8] sm:$0xff]
      %v1456 = vld [vmem:[%s7 + $0xd0] sm:$0xff]
      %v1457 = vld [vmem:[%s7 + $0xd8] sm:$0xff]
      %v1458 = vld [vmem:[%s7 + $0xe0] sm:$0xff]
      %v1459 = vld [vmem:[%s7 + $0xe8] sm:$0xff]
      %v1460 = vld [vmem:[%s7 + $0xf0] sm:$0xff]
      %v1461 = vld [vmem:[%s7 + $0xf8] sm:$0xff]
      %v1462 = vld [vmem:[%s8] sm:$0xff]
      %v1463 = vld [vmem:[%s8 + $0x8] sm:$0xff]
      %v1464 = vld [vmem:[%s8 + $0x10] sm:$0xff]
      %v1465 = vld [vmem:[%s8 + $0x18] sm:$0xff]
      %v1466 = vld [vmem:[%s8 + $0x20] sm:$0xff]
      %v1467 = vld [vmem:[%s8 + $0x28] sm:$0xff]
      %v1468 = vld [vmem:[%s8 + $0x30] sm:$0xff]
      %v1469 = vld [vmem:[%s8 + $0x38] sm:$0xff]
      %v1470 = vld [vmem:[%s8 + $0x40] sm:$0xff]
      %v1471 = vld [vmem:[%s8 + $0x48] sm:$0xff]
      %v1472 = vld [vmem:[%s8 + $0x50] sm:$0xff]
      %v1473 = vld [vmem:[%s8 + $0x58] sm:$0xff]
      %v1474 = vld [vmem:[%s8 + $0x60] sm:$0xff]
      %v1475 = vld [vmem:[%s8 + $0x68] sm:$0xff]
      %v1476 = vld [vmem:[%s8 + $0x70] sm:$0xff]
      %v1477 = vld [vmem:[%s8 + $0x78] sm:$0xff]
      %v1478 = vld [vmem:[%s8 + $0x80] sm:$0xff]
      %v1479 = vld [vmem:[%s8 + $0x88] sm:$0xff]
      %v1480 = vld [vmem:[%s8 + $0x90] sm:$0xff]
      %v1481 = vld [vmem:[%s8 + $0x98] sm:$0xff]
      %v1482 = vld [vmem:[%s8 + $0xa0] sm:$0xff]
      %v1483 = vld [vmem:[%s8 + $0xa8] sm:$0xff]
      %v1484 = vld [vmem:[%s8 + $0xb0] sm:$0xff]
      %v1485 = vld [vmem:[%s8 + $0xb8] sm:$0xff]
      %v1486 = vld [vmem:[%s8 + $0xc0] sm:$0xff]
      %v1487 = vld [vmem:[%s8 + $0xc8] sm:$0xff]
      %v1488 = vld [vmem:[%s8 + $0xd0] sm:$0xff]
      %v1489 = vld [vmem:[%s8 + $0xd8] sm:$0xff]
      %v1490 = vld [vmem:[%s8 + $0xe0] sm:$0xff]
      %v1491 = vld [vmem:[%s8 + $0xe8] sm:$0xff]
      %v1492 = vld [vmem:[%s8 + $0xf0] sm:$0xff]
      %v1493 = vld [vmem:[%s8 + $0xf8] sm:$0xff]
      %1495 = vset.pattern.permute.xlu0 0
      %1496 = vperm.xlu0 %1495, %v1462
      %v1497 = vpop.permute.xlu0 %1496
      %1500 = vset.pattern.permute.xlu0 0
      %1501 = vperm.xlu0 %1500, %v1463
      %v1502 = vpop.permute.xlu0 %1501
      %1505 = vset.pattern.permute.xlu0 0
      %1506 = vperm.xlu0 %1505, %v1464
      %v1507 = vpop.permute.xlu0 %1506
      %1510 = vset.pattern.permute.xlu0 0
      %1511 = vperm.xlu0 %1510, %v1465
      %v1512 = vpop.permute.xlu0 %1511
      %1515 = vset.pattern.permute.xlu0 0
      %1516 = vperm.xlu0 %1515, %v1466
      %v1517 = vpop.permute.xlu0 %1516
      %1520 = vset.pattern.permute.xlu0 0
      %1521 = vperm.xlu0 %1520, %v1467
      %v1522 = vpop.permute.xlu0 %1521
      %1525 = vset.pattern.permute.xlu0 0
      %1526 = vperm.xlu0 %1525, %v1468
      %v1527 = vpop.permute.xlu0 %1526
      %1530 = vset.pattern.permute.xlu0 0
      %1531 = vperm.xlu0 %1530, %v1469
      %v1532 = vpop.permute.xlu0 %1531
      %1535 = vset.pattern.permute.xlu0 0
      %1536 = vperm.xlu0 %1535, %v1470
      %v1537 = vpop.permute.xlu0 %1536
      %1540 = vset.pattern.permute.xlu0 0
      %1541 = vperm.xlu0 %1540, %v1471
      %v1542 = vpop.permute.xlu0 %1541
      %1545 = vset.pattern.permute.xlu0 0
      %1546 = vperm.xlu0 %1545, %v1472
      %v1547 = vpop.permute.xlu0 %1546
      %1550 = vset.pattern.permute.xlu0 0
      %1551 = vperm.xlu0 %1550, %v1473
      %v1552 = vpop.permute.xlu0 %1551
      %1555 = vset.pattern.permute.xlu0 0
      %1556 = vperm.xlu0 %1555, %v1474
      %v1557 = vpop.permute.xlu0 %1556
      %1560 = vset.pattern.permute.xlu0 0
      %1561 = vperm.xlu0 %1560, %v1475
      %v1562 = vpop.permute.xlu0 %1561
      %1565 = vset.pattern.permute.xlu0 0
      %1566 = vperm.xlu0 %1565, %v1476
      %v1567 = vpop.permute.xlu0 %1566
      %1570 = vset.pattern.permute.xlu0 0
      %1571 = vperm.xlu0 %1570, %v1477
      %v1572 = vpop.permute.xlu0 %1571
      %1575 = vset.pattern.permute.xlu0 0
      %1576 = vperm.xlu0 %1575, %v1478
      %v1577 = vpop.permute.xlu0 %1576
      %1580 = vset.pattern.permute.xlu0 0
      %1581 = vperm.xlu0 %1580, %v1479
      %v1582 = vpop.permute.xlu0 %1581
      %1585 = vset.pattern.permute.xlu0 0
      %1586 = vperm.xlu0 %1585, %v1480
      %v1587 = vpop.permute.xlu0 %1586
      %1590 = vset.pattern.permute.xlu0 0
      %1591 = vperm.xlu0 %1590, %v1481
      %v1592 = vpop.permute.xlu0 %1591
      %1595 = vset.pattern.permute.xlu0 0
      %1596 = vperm.xlu0 %1595, %v1482
      %v1597 = vpop.permute.xlu0 %1596
      %1600 = vset.pattern.permute.xlu0 0
      %1601 = vperm.xlu0 %1600, %v1483
      %v1602 = vpop.permute.xlu0 %1601
      %1605 = vset.pattern.permute.xlu0 0
      %1606 = vperm.xlu0 %1605, %v1484
      %v1607 = vpop.permute.xlu0 %1606
      %1610 = vset.pattern.permute.xlu0 0
      %1611 = vperm.xlu0 %1610, %v1485
      %v1612 = vpop.permute.xlu0 %1611
      %1615 = vset.pattern.permute.xlu0 0
      %1616 = vperm.xlu0 %1615, %v1486
      %v1617 = vpop.permute.xlu0 %1616
      %1620 = vset.pattern.permute.xlu0 0
      %1621 = vperm.xlu0 %1620, %v1487
      %v1622 = vpop.permute.xlu0 %1621
      %1625 = vset.pattern.permute.xlu0 0
      %1626 = vperm.xlu0 %1625, %v1488
      %v1627 = vpop.permute.xlu0 %1626
      %1630 = vset.pattern.permute.xlu0 0
      %1631 = vperm.xlu0 %1630, %v1489
      %v1632 = vpop.permute.xlu0 %1631
      %1635 = vset.pattern.permute.xlu0 0
      %1636 = vperm.xlu0 %1635, %v1490
      %v1637 = vpop.permute.xlu0 %1636
      %1640 = vset.pattern.permute.xlu0 0
      %1641 = vperm.xlu0 %1640, %v1491
      %v1642 = vpop.permute.xlu0 %1641
      %1645 = vset.pattern.permute.xlu0 0
      %1646 = vperm.xlu0 %1645, %v1492
      %v1647 = vpop.permute.xlu0 %1646
      %1650 = vset.pattern.permute.xlu0 0
      %1651 = vperm.xlu0 %1650, %v1493
      %v1652 = vpop.permute.xlu0 %1651
      %v1686 = vunpack.c.l.b16 %v1430
      %v1687 = vunpack.c.h.b16 %v1430
      %v1688 = vunpack.c.l.b16 %v1431
      %v1689 = vunpack.c.h.b16 %v1431
      %v1690 = vunpack.c.l.b16 %v1432
      %v1691 = vunpack.c.h.b16 %v1432
      %v1692 = vunpack.c.l.b16 %v1433
      %v1693 = vunpack.c.h.b16 %v1433
      %v1694 = vunpack.c.l.b16 %v1434
      %v1695 = vunpack.c.h.b16 %v1434
      %v1696 = vunpack.c.l.b16 %v1435
      %v1697 = vunpack.c.h.b16 %v1435
      %v1698 = vunpack.c.l.b16 %v1436
      %v1699 = vunpack.c.h.b16 %v1436
      %v1700 = vunpack.c.l.b16 %v1437
      %v1701 = vunpack.c.h.b16 %v1437
      %v1702 = vunpack.c.l.b16 %v1438
      %v1703 = vunpack.c.h.b16 %v1438
      %v1704 = vunpack.c.l.b16 %v1439
      %v1705 = vunpack.c.h.b16 %v1439
      %v1706 = vunpack.c.l.b16 %v1440
      %v1707 = vunpack.c.h.b16 %v1440
      %v1708 = vunpack.c.l.b16 %v1441
      %v1709 = vunpack.c.h.b16 %v1441
      %v1710 = vunpack.c.l.b16 %v1442
      %v1711 = vunpack.c.h.b16 %v1442
      %v1712 = vunpack.c.l.b16 %v1443
      %v1713 = vunpack.c.h.b16 %v1443
      %v1714 = vunpack.c.l.b16 %v1444
      %v1715 = vunpack.c.h.b16 %v1444
      %v1716 = vunpack.c.l.b16 %v1445
      %v1717 = vunpack.c.h.b16 %v1445
      %v1718 = vunpack.c.l.b16 %v1446
      %v1719 = vunpack.c.h.b16 %v1446
      %v1720 = vunpack.c.l.b16 %v1447
      %v1721 = vunpack.c.h.b16 %v1447
      %v1722 = vunpack.c.l.b16 %v1448
      %v1723 = vunpack.c.h.b16 %v1448
      %v1724 = vunpack.c.l.b16 %v1449
      %v1725 = vunpack.c.h.b16 %v1449
      %v1726 = vunpack.c.l.b16 %v1450
      %v1727 = vunpack.c.h.b16 %v1450
      %v1728 = vunpack.c.l.b16 %v1451
      %v1729 = vunpack.c.h.b16 %v1451
      %v1730 = vunpack.c.l.b16 %v1452
      %v1731 = vunpack.c.h.b16 %v1452
      %v1732 = vunpack.c.l.b16 %v1453
      %v1733 = vunpack.c.h.b16 %v1453
      %v1734 = vunpack.c.l.b16 %v1454
      %v1735 = vunpack.c.h.b16 %v1454
      %v1736 = vunpack.c.l.b16 %v1455
      %v1737 = vunpack.c.h.b16 %v1455
      %v1738 = vunpack.c.l.b16 %v1456
      %v1739 = vunpack.c.h.b16 %v1456
      %v1740 = vunpack.c.l.b16 %v1457
      %v1741 = vunpack.c.h.b16 %v1457
      %v1742 = vunpack.c.l.b16 %v1458
      %v1743 = vunpack.c.h.b16 %v1458
      %v1744 = vunpack.c.l.b16 %v1459
      %v1745 = vunpack.c.h.b16 %v1459
      %v1746 = vunpack.c.l.b16 %v1460
      %v1747 = vunpack.c.h.b16 %v1460
      %v1748 = vunpack.c.l.b16 %v1461
      %v1749 = vunpack.c.h.b16 %v1461
      %v1750 = vpack.c.b16 %v1688, %v1686
      %v1751 = vpack.c.b16 %v1689, %v1687
      %v1752 = vpack.c.b16 %v1692, %v1690
      %v1753 = vpack.c.b16 %v1693, %v1691
      %v1754 = vpack.c.b16 %v1696, %v1694
      %v1755 = vpack.c.b16 %v1697, %v1695
      %v1756 = vpack.c.b16 %v1700, %v1698
      %v1757 = vpack.c.b16 %v1701, %v1699
      %v1758 = vpack.c.b16 %v1704, %v1702
      %v1759 = vpack.c.b16 %v1705, %v1703
      %v1760 = vpack.c.b16 %v1708, %v1706
      %v1761 = vpack.c.b16 %v1709, %v1707
      %v1762 = vpack.c.b16 %v1712, %v1710
      %v1763 = vpack.c.b16 %v1713, %v1711
      %v1764 = vpack.c.b16 %v1716, %v1714
      %v1765 = vpack.c.b16 %v1717, %v1715
      %v1766 = vpack.c.b16 %v1720, %v1718
      %v1767 = vpack.c.b16 %v1721, %v1719
      %v1768 = vpack.c.b16 %v1724, %v1722
      %v1769 = vpack.c.b16 %v1725, %v1723
      %v1770 = vpack.c.b16 %v1728, %v1726
      %v1771 = vpack.c.b16 %v1729, %v1727
      %v1772 = vpack.c.b16 %v1732, %v1730
      %v1773 = vpack.c.b16 %v1733, %v1731
      %v1774 = vpack.c.b16 %v1736, %v1734
      %v1775 = vpack.c.b16 %v1737, %v1735
      %v1776 = vpack.c.b16 %v1740, %v1738
      %v1777 = vpack.c.b16 %v1741, %v1739
      %v1778 = vpack.c.b16 %v1744, %v1742
      %v1779 = vpack.c.b16 %v1745, %v1743
      %v1780 = vpack.c.b16 %v1748, %v1746
      %v1781 = vpack.c.b16 %v1749, %v1747
      %1814 = vmatprep.subr.bf16.mxu0 0
      %1815 = vmatpush1.bf16.msra.mxu0 %v1414
      %1816 = vmatprep.subr.bf16.mxu0 0
      %1817 = vmatpush1.bf16.msra.mxu0 %v1415
      %1818 = vmatprep.subr.bf16.mxu0 0
      %1819 = vmatpush1.bf16.msra.mxu0 %v1416
      %1820 = vmatprep.subr.bf16.mxu0 0
      %1821 = vmatpush1.bf16.msra.mxu0 %v1417
      %1822 = vmatprep.subr.bf16.mxu0 0
      %1823 = vmatpush1.bf16.msra.mxu0 %v1418
      %1824 = vmatprep.subr.bf16.mxu0 0
      %1825 = vmatpush1.bf16.msra.mxu0 %v1419
      %1826 = vmatprep.subr.bf16.mxu0 0
      %1827 = vmatpush1.bf16.msra.mxu0 %v1420
      %1828 = vmatprep.subr.bf16.mxu0 0
      %1829 = vmatpush1.bf16.msra.mxu0 %v1421
      %1830 = vmatprep.subr.bf16.mxu0 0
      %1831 = vmatpush1.bf16.msra.mxu0 %v1422
      %1832 = vmatprep.subr.bf16.mxu0 0
      %1833 = vmatpush1.bf16.msra.mxu0 %v1423
      %1834 = vmatprep.subr.bf16.mxu0 0
      %1835 = vmatpush1.bf16.msra.mxu0 %v1424
      %1836 = vmatprep.subr.bf16.mxu0 0
      %1837 = vmatpush1.bf16.msra.mxu0 %v1425
      %1838 = vmatprep.subr.bf16.mxu0 0
      %1839 = vmatpush1.bf16.msra.mxu0 %v1426
      %1840 = vmatprep.subr.bf16.mxu0 0
      %1841 = vmatpush1.bf16.msra.mxu0 %v1427
      %1842 = vmatprep.subr.bf16.mxu0 0
      %1843 = vmatpush1.bf16.msra.mxu0 %v1428
      %1844 = vmatprep.subr.bf16.mxu0 0
      %1845 = vmatpush1.bf16.msra.mxu0 %v1429
      %1846 = vmatprep.mubr.bf16.mxu0 %v1751
      %1847 = vmatmul.mubr.bf16.gmra.mrb[0].mxu0 %v1750
      %v1848 = vpop.f32.mrb[0].mxu0
      %v1849 = vadd.f32 %v1497, %v1848
      %v1850 = vpop.f32.mrb[0].mxu0
      %v1851 = vpop.f32.mrb[0].mxu0
      %v1852 = vadd.f32 %v1502, %v1851
      %v1853 = vpop.f32.mrb[0].mxu0
      %1854 = vmatprep.mubr.bf16.mxu0 %v1753
      %1855 = vmatmul.mubr.bf16.gmra.mrb[0].mxu0 %v1752
      %v1856 = vpop.f32.mrb[0].mxu0
      %v1857 = vadd.f32 %v1507, %v1856
      %v1858 = vpop.f32.mrb[0].mxu0
      %v1859 = vpop.f32.mrb[0].mxu0
      %v1860 = vadd.f32 %v1512, %v1859
      %v1861 = vpop.f32.mrb[0].mxu0
      %1862 = vmatprep.mubr.bf16.mxu0 %v1755
      %1863 = vmatmul.mubr.bf16.gmra.mrb[0].mxu0 %v1754
      %v1864 = vpop.f32.mrb[0].mxu0
      %v1865 = vadd.f32 %v1517, %v1864
      %v1866 = vpop.f32.mrb[0].mxu0
      %v1867 = vpop.f32.mrb[0].mxu0
      %v1868 = vadd.f32 %v1522, %v1867
      %v1869 = vpop.f32.mrb[0].mxu0
      %1870 = vmatprep.mubr.bf16.mxu0 %v1757
      %1871 = vmatmul.mubr.bf16.gmra.mrb[0].mxu0 %v1756
      %v1872 = vpop.f32.mrb[0].mxu0
      %v1873 = vadd.f32 %v1527, %v1872
      %v1874 = vpop.f32.mrb[0].mxu0
      %v1875 = vpop.f32.mrb[0].mxu0
      %v1876 = vadd.f32 %v1532, %v1875
      %v1877 = vpop.f32.mrb[0].mxu0
      %1878 = vmatprep.mubr.bf16.mxu0 %v1759
      %1879 = vmatmul.mubr.bf16.gmra.mrb[0].mxu0 %v1758
      %v1880 = vpop.f32.mrb[0].mxu0
      %v1881 = vadd.f32 %v1537, %v1880
      %v1882 = vpop.f32.mrb[0].mxu0
      %v1883 = vpop.f32.mrb[0].mxu0
      %v1884 = vadd.f32 %v1542, %v1883
      %v1885 = vpop.f32.mrb[0].mxu0
      %1886 = vmatprep.mubr.bf16.mxu0 %v1761
      %1887 = vmatmul.mubr.bf16.gmra.mrb[0].mxu0 %v1760
      %v1888 = vpop.f32.mrb[0].mxu0
      %v1889 = vadd.f32 %v1547, %v1888
      %v1890 = vpop.f32.mrb[0].mxu0
      %v1891 = vpop.f32.mrb[0].mxu0
      %v1892 = vadd.f32 %v1552, %v1891
      %v1893 = vpop.f32.mrb[0].mxu0
      %1894 = vmatprep.mubr.bf16.mxu0 %v1763
      %1895 = vmatmul.mubr.bf16.gmra.mrb[0].mxu0 %v1762
      %v1896 = vpop.f32.mrb[0].mxu0
      %v1897 = vadd.f32 %v1557, %v1896
      %v1898 = vpop.f32.mrb[0].mxu0
      %v1899 = vpop.f32.mrb[0].mxu0
      %v1900 = vadd.f32 %v1562, %v1899
      %v1901 = vpop.f32.mrb[0].mxu0
      %1902 = vmatprep.mubr.bf16.mxu0 %v1765
      %1903 = vmatmul.mubr.bf16.gmra.mrb[0].mxu0 %v1764
      %v1904 = vpop.f32.mrb[0].mxu0
      %v1905 = vadd.f32 %v1567, %v1904
      %v1906 = vpop.f32.mrb[0].mxu0
      %v1907 = vpop.f32.mrb[0].mxu0
      %v1908 = vadd.f32 %v1572, %v1907
      %v1909 = vpop.f32.mrb[0].mxu0
      %1910 = vmatprep.mubr.bf16.mxu0 %v1767
      %1911 = vmatmul.mubr.bf16.gmra.mrb[0].mxu0 %v1766
      %v1912 = vpop.f32.mrb[0].mxu0
      %v1913 = vadd.f32 %v1577, %v1912
      %v1914 = vpop.f32.mrb[0].mxu0
      %v1915 = vpop.f32.mrb[0].mxu0
      %v1916 = vadd.f32 %v1582, %v1915
      %v1917 = vpop.f32.mrb[0].mxu0
      %1918 = vmatprep.mubr.bf16.mxu0 %v1769
      %1919 = vmatmul.mubr.bf16.gmra.mrb[0].mxu0 %v1768
      %v1920 = vpop.f32.mrb[0].mxu0
      %v1921 = vadd.f32 %v1587, %v1920
      %v1922 = vpop.f32.mrb[0].mxu0
      %v1923 = vpop.f32.mrb[0].mxu0
      %v1924 = vadd.f32 %v1592, %v1923
      %v1925 = vpop.f32.mrb[0].mxu0
      %1926 = vmatprep.mubr.bf16.mxu0 %v1771
      %1927 = vmatmul.mubr.bf16.gmra.mrb[0].mxu0 %v1770
      %v1928 = vpop.f32.mrb[0].mxu0
      %v1929 = vadd.f32 %v1597, %v1928
      %v1930 = vpop.f32.mrb[0].mxu0
      %v1931 = vpop.f32.mrb[0].mxu0
      %v1932 = vadd.f32 %v1602, %v1931
      %v1933 = vpop.f32.mrb[0].mxu0
      %1934 = vmatprep.mubr.bf16.mxu0 %v1773
      %1935 = vmatmul.mubr.bf16.gmra.mrb[0].mxu0 %v1772
      %v1936 = vpop.f32.mrb[0].mxu0
      %v1937 = vadd.f32 %v1607, %v1936
      %v1938 = vpop.f32.mrb[0].mxu0
      %v1939 = vpop.f32.mrb[0].mxu0
      %v1940 = vadd.f32 %v1612, %v1939
      %v1941 = vpop.f32.mrb[0].mxu0
      %1942 = vmatprep.mubr.bf16.mxu0 %v1775
      %1943 = vmatmul.mubr.bf16.gmra.mrb[0].mxu0 %v1774
      %v1944 = vpop.f32.mrb[0].mxu0
      %v1945 = vadd.f32 %v1617, %v1944
      %v1946 = vpop.f32.mrb[0].mxu0
      %v1947 = vpop.f32.mrb[0].mxu0
      %v1948 = vadd.f32 %v1622, %v1947
      %v1949 = vpop.f32.mrb[0].mxu0
      %1950 = vmatprep.mubr.bf16.mxu0 %v1777
      %1951 = vmatmul.mubr.bf16.gmra.mrb[0].mxu0 %v1776
      %v1952 = vpop.f32.mrb[0].mxu0
      %v1953 = vadd.f32 %v1627, %v1952
      %v1954 = vpop.f32.mrb[0].mxu0
      %v1955 = vpop.f32.mrb[0].mxu0
      %v1956 = vadd.f32 %v1632, %v1955
      %v1957 = vpop.f32.mrb[0].mxu0
      %1958 = vmatprep.mubr.bf16.mxu0 %v1779
      %1959 = vmatmul.mubr.bf16.gmra.mrb[0].mxu0 %v1778
      %v1960 = vpop.f32.mrb[0].mxu0
      %v1961 = vadd.f32 %v1637, %v1960
      %v1962 = vpop.f32.mrb[0].mxu0
      %v1963 = vpop.f32.mrb[0].mxu0
      %v1964 = vadd.f32 %v1642, %v1963
      %v1965 = vpop.f32.mrb[0].mxu0
      %1966 = vmatprep.mubr.bf16.mxu0 %v1781
      %1967 = vmatmul.mubr.bf16.gmra.mrb[0].mxu0 %v1780
      %v1968 = vpop.f32.mrb[0].mxu0
      %v1969 = vadd.f32 %v1647, %v1968
      %v1970 = vpop.f32.mrb[0].mxu0
      %v1971 = vpop.f32.mrb[0].mxu0
      %v1972 = vadd.f32 %v1652, %v1971
      %v1973 = vpop.f32.mrb[0].mxu0
      %1974 = vdwg.mxu0
      %vm1975 = vcmask 130048
      %1976 = vst.msk [vmem:[%s419] sm:$0xff] %vm1975, %v1849
      %1977 = vst.msk [vmem:[%s419 + $0x8] sm:$0xff] %vm1975, %v1852
      %1978 = vst.msk [vmem:[%s419 + $0x10] sm:$0xff] %vm1975, %v1857
      %1979 = vst.msk [vmem:[%s419 + $0x18] sm:$0xff] %vm1975, %v1860
      %1980 = vst.msk [vmem:[%s419 + $0x20] sm:$0xff] %vm1975, %v1865
      %1981 = vst.msk [vmem:[%s419 + $0x28] sm:$0xff] %vm1975, %v1868
      %1982 = vst.msk [vmem:[%s419 + $0x30] sm:$0xff] %vm1975, %v1873
      %1983 = vst.msk [vmem:[%s419 + $0x38] sm:$0xff] %vm1975, %v1876
      %1984 = vst.msk [vmem:[%s419 + $0x40] sm:$0xff] %vm1975, %v1881
      %1985 = vst.msk [vmem:[%s419 + $0x48] sm:$0xff] %vm1975, %v1884
      %1986 = vst.msk [vmem:[%s419 + $0x50] sm:$0xff] %vm1975, %v1889
      %1987 = vst.msk [vmem:[%s419 + $0x58] sm:$0xff] %vm1975, %v1892
      %1988 = vst.msk [vmem:[%s419 + $0x60] sm:$0xff] %vm1975, %v1897
      %1989 = vst.msk [vmem:[%s419 + $0x68] sm:$0xff] %vm1975, %v1900
      %1990 = vst.msk [vmem:[%s419 + $0x70] sm:$0xff] %vm1975, %v1905
      %1991 = vst.msk [vmem:[%s419 + $0x78] sm:$0xff] %vm1975, %v1908
      %1992 = vst.msk [vmem:[%s419 + $0x80] sm:$0xff] %vm1975, %v1913
      %1993 = vst.msk [vmem:[%s419 + $0x88] sm:$0xff] %vm1975, %v1916
      %1994 = vst.msk [vmem:[%s419 + $0x90] sm:$0xff] %vm1975, %v1921
      %1995 = vst.msk [vmem:[%s419 + $0x98] sm:$0xff] %vm1975, %v1924
      %1996 = vst.msk [vmem:[%s419 + $0xa0] sm:$0xff] %vm1975, %v1929
      %1997 = vst.msk [vmem:[%s419 + $0xa8] sm:$0xff] %vm1975, %v1932
      %1998 = vst.msk [vmem:[%s419 + $0xb0] sm:$0xff] %vm1975, %v1937
      %1999 = vst.msk [vmem:[%s419 + $0xb8] sm:$0xff] %vm1975, %v1940
      %2000 = vst.msk [vmem:[%s419 + $0xc0] sm:$0xff] %vm1975, %v1945
      %2001 = vst.msk [vmem:[%s419 + $0xc8] sm:$0xff] %vm1975, %v1948
      %2002 = vst.msk [vmem:[%s419 + $0xd0] sm:$0xff] %vm1975, %v1953
      %2003 = vst.msk [vmem:[%s419 + $0xd8] sm:$0xff] %vm1975, %v1956
      %2004 = vst.msk [vmem:[%s419 + $0xe0] sm:$0xff] %vm1975, %v1961
      %2005 = vst.msk [vmem:[%s419 + $0xe8] sm:$0xff] %vm1975, %v1964
      %2006 = vst.msk [vmem:[%s419 + $0xf0] sm:$0xff] %vm1975, %v1969
      %2007 = vst.msk [vmem:[%s419 + $0xf8] sm:$0xff] %vm1975, %v1972
      %v2008 = vsel %vm1975, %v1849, -inf
      %2009 = vmax.xlane.f32.xlu0 %v2008
      %v2010 = vpop.xlane.xlu0 %2009
      %v2011 = vsel %vm1975, %v1852, -inf
      %2012 = vmax.xlane.f32.xlu0 %v2011
      %v2013 = vpop.xlane.xlu0 %2012
      %v2014 = vsel %vm1975, %v1857, -inf
      %2015 = vmax.xlane.f32.xlu0 %v2014
      %v2016 = vpop.xlane.xlu0 %2015
      %v2017 = vsel %vm1975, %v1860, -inf
      %2018 = vmax.xlane.f32.xlu0 %v2017
      %v2019 = vpop.xlane.xlu0 %2018
      %v2020 = vsel %vm1975, %v1865, -inf
      %2021 = vmax.xlane.f32.xlu0 %v2020
      %v2022 = vpop.xlane.xlu0 %2021
      %v2023 = vsel %vm1975, %v1868, -inf
      %2024 = vmax.xlane.f32.xlu0 %v2023
      %v2025 = vpop.xlane.xlu0 %2024
      %v2026 = vsel %vm1975, %v1873, -inf
      %2027 = vmax.xlane.f32.xlu0 %v2026
      %v2028 = vpop.xlane.xlu0 %2027
      %v2029 = vsel %vm1975, %v1876, -inf
      %2030 = vmax.xlane.f32.xlu0 %v2029
      %v2031 = vpop.xlane.xlu0 %2030
      %v2032 = vsel %vm1975, %v1881, -inf
      %2033 = vmax.xlane.f32.xlu0 %v2032
      %v2034 = vpop.xlane.xlu0 %2033
      %v2035 = vsel %vm1975, %v1884, -inf
      %2036 = vmax.xlane.f32.xlu0 %v2035
      %v2037 = vpop.xlane.xlu0 %2036
      %v2038 = vsel %vm1975, %v1889, -inf
      %2039 = vmax.xlane.f32.xlu0 %v2038
      %v2040 = vpop.xlane.xlu0 %2039
      %v2041 = vsel %vm1975, %v1892, -inf
      %2042 = vmax.xlane.f32.xlu0 %v2041
      %v2043 = vpop.xlane.xlu0 %2042
      %v2044 = vsel %vm1975, %v1897, -inf
      %2045 = vmax.xlane.f32.xlu0 %v2044
      %v2046 = vpop.xlane.xlu0 %2045
      %v2047 = vsel %vm1975, %v1900, -inf
      %2048 = vmax.xlane.f32.xlu0 %v2047
      %v2049 = vpop.xlane.xlu0 %2048
      %v2050 = vsel %vm1975, %v1905, -inf
      %2051 = vmax.xlane.f32.xlu0 %v2050
      %v2052 = vpop.xlane.xlu0 %2051
      %v2053 = vsel %vm1975, %v1908, -inf
      %2054 = vmax.xlane.f32.xlu0 %v2053
      %v2055 = vpop.xlane.xlu0 %2054
      %v2056 = vsel %vm1975, %v1913, -inf
      %2057 = vmax.xlane.f32.xlu0 %v2056
      %v2058 = vpop.xlane.xlu0 %2057
      %v2059 = vsel %vm1975, %v1916, -inf
      %2060 = vmax.xlane.f32.xlu0 %v2059
      %v2061 = vpop.xlane.xlu0 %2060
      %v2062 = vsel %vm1975, %v1921, -inf
      %2063 = vmax.xlane.f32.xlu0 %v2062
      %v2064 = vpop.xlane.xlu0 %2063
      %v2065 = vsel %vm1975, %v1924, -inf
      %2066 = vmax.xlane.f32.xlu0 %v2065
      %v2067 = vpop.xlane.xlu0 %2066
      %v2068 = vsel %vm1975, %v1929, -inf
      %2069 = vmax.xlane.f32.xlu0 %v2068
      %v2070 = vpop.xlane.xlu0 %2069
      %v2071 = vsel %vm1975, %v1932, -inf
      %2072 = vmax.xlane.f32.xlu0 %v2071
      %v2073 = vpop.xlane.xlu0 %2072
      %v2074 = vsel %vm1975, %v1937, -inf
      %2075 = vmax.xlane.f32.xlu0 %v2074
      %v2076 = vpop.xlane.xlu0 %2075
      %v2077 = vsel %vm1975, %v1940, -inf
      %2078 = vmax.xlane.f32.xlu0 %v2077
      %v2079 = vpop.xlane.xlu0 %2078
      %v2080 = vsel %vm1975, %v1945, -inf
      %2081 = vmax.xlane.f32.xlu0 %v2080
      %v2082 = vpop.xlane.xlu0 %2081
      %v2083 = vsel %vm1975, %v1948, -inf
      %2084 = vmax.xlane.f32.xlu0 %v2083
      %v2085 = vpop.xlane.xlu0 %2084
      %v2086 = vsel %vm1975, %v1953, -inf
      %2087 = vmax.xlane.f32.xlu0 %v2086
      %v2088 = vpop.xlane.xlu0 %2087
      %v2089 = vsel %vm1975, %v1956, -inf
      %2090 = vmax.xlane.f32.xlu0 %v2089
      %v2091 = vpop.xlane.xlu0 %2090
      %v2092 = vsel %vm1975, %v1961, -inf
      %2093 = vmax.xlane.f32.xlu0 %v2092
      %v2094 = vpop.xlane.xlu0 %2093
      %v2095 = vsel %vm1975, %v1964, -inf
      %2096 = vmax.xlane.f32.xlu0 %v2095
      %v2097 = vpop.xlane.xlu0 %2096
      %v2098 = vsel %vm1975, %v1969, -inf
      %2099 = vmax.xlane.f32.xlu0 %v2098
      %v2100 = vpop.xlane.xlu0 %2099
      %v2101 = vsel %vm1975, %v1972, -inf
      %2102 = vmax.xlane.f32.xlu0 %v2101
      %v2103 = vpop.xlane.xlu0 %2102
      %p2104 = scmp.eq.s32.totalorder %s29, 0
      // Predicated region
      $region57: #{tpu_custom_call.1} parent=55 // pred_check
        %p2105 = pneg %p2104
      $region58: #{tpu_custom_call.1} parent=55 // pred_check_branch
        %2107 = sbr.rel (%p2105) target = $region60
      $region59: #{tpu_custom_call.1} parent=55 // pred_region
        %vm2108 = vcmask 7168
        %2109 = vst.msk [vmem:[%s429] sm:$0xff] %vm2108, %v2010
        %2110 = vst.msk [vmem:[%s429 + $0x8] sm:$0xff] %vm2108, %v2013
        %2111 = vst.msk [vmem:[%s429 + $0x10] sm:$0xff] %vm2108, %v2016
        %2112 = vst.msk [vmem:[%s429 + $0x18] sm:$0xff] %vm2108, %v2019
        %2113 = vst.msk [vmem:[%s429 + $0x20] sm:$0xff] %vm2108, %v2022
        %2114 = vst.msk [vmem:[%s429 + $0x28] sm:$0xff] %vm2108, %v2025
        %2115 = vst.msk [vmem:[%s429 + $0x30] sm:$0xff] %vm2108, %v2028
        %2116 = vst.msk [vmem:[%s429 + $0x38] sm:$0xff] %vm2108, %v2031
        %2117 = vst.msk [vmem:[%s429 + $0x40] sm:$0xff] %vm2108, %v2034
        %2118 = vst.msk [vmem:[%s429 + $0x48] sm:$0xff] %vm2108, %v2037
        %2119 = vst.msk [vmem:[%s429 + $0x50] sm:$0xff] %vm2108, %v2040
        %2120 = vst.msk [vmem:[%s429 + $0x58] sm:$0xff] %vm2108, %v2043
        %2121 = vst.msk [vmem:[%s429 + $0x60] sm:$0xff] %vm2108, %v2046
        %2122 = vst.msk [vmem:[%s429 + $0x68] sm:$0xff] %vm2108, %v2049
        %2123 = vst.msk [vmem:[%s429 + $0x70] sm:$0xff] %vm2108, %v2052
        %2124 = vst.msk [vmem:[%s429 + $0x78] sm:$0xff] %vm2108, %v2055
        %2125 = vst.msk [vmem:[%s429 + $0x80] sm:$0xff] %vm2108, %v2058
        %2126 = vst.msk [vmem:[%s429 + $0x88] sm:$0xff] %vm2108, %v2061
        %2127 = vst.msk [vmem:[%s429 + $0x90] sm:$0xff] %vm2108, %v2064
        %2128 = vst.msk [vmem:[%s429 + $0x98] sm:$0xff] %vm2108, %v2067
        %2129 = vst.msk [vmem:[%s429 + $0xa0] sm:$0xff] %vm2108, %v2070
        %2130 = vst.msk [vmem:[%s429 + $0xa8] sm:$0xff] %vm2108, %v2073
        %2131 = vst.msk [vmem:[%s429 + $0xb0] sm:$0xff] %vm2108, %v2076
        %2132 = vst.msk [vmem:[%s429 + $0xb8] sm:$0xff] %vm2108, %v2079
        %2133 = vst.msk [vmem:[%s429 + $0xc0] sm:$0xff] %vm2108, %v2082
        %2134 = vst.msk [vmem:[%s429 + $0xc8] sm:$0xff] %vm2108, %v2085
        %2135 = vst.msk [vmem:[%s429 + $0xd0] sm:$0xff] %vm2108, %v2088
        %2136 = vst.msk [vmem:[%s429 + $0xd8] sm:$0xff] %vm2108, %v2091
        %2137 = vst.msk [vmem:[%s429 + $0xe0] sm:$0xff] %vm2108, %v2094
        %2138 = vst.msk [vmem:[%s429 + $0xe8] sm:$0xff] %vm2108, %v2097
        %2139 = vst.msk [vmem:[%s429 + $0xf0] sm:$0xff] %vm2108, %v2100
        %2140 = vst.msk [vmem:[%s429 + $0xf8] sm:$0xff] %vm2108, %v2103
      $region60: #{tpu_custom_call.1} parent=55 // pred_fallthru
        _
      %p2141 = scmp.ne.s32.totalorder %s29, 0
      // Predicated region
      $region61: #{tpu_custom_call.1} parent=55 // pred_check
        %p2142 = pneg %p2141
      $region62: #{tpu_custom_call.1} parent=55 // pred_check_branch
        %2144 = sbr.rel (%p2142) target = $region64
      $region63: #{tpu_custom_call.1} parent=55 // pred_region
        %v2145 = vld [vmem:[%s429] sm:$0xff]
        %v2146 = vld [vmem:[%s429 + $0x8] sm:$0xff]
        %v2147 = vld [vmem:[%s429 + $0x10] sm:$0xff]
        %v2148 = vld [vmem:[%s429 + $0x18] sm:$0xff]
        %v2149 = vld [vmem:[%s429 + $0x20] sm:$0xff]
        %v2150 = vld [vmem:[%s429 + $0x28] sm:$0xff]
        %v2151 = vld [vmem:[%s429 + $0x30] sm:$0xff]
        %v2152 = vld [vmem:[%s429 + $0x38] sm:$0xff]
        %v2153 = vld [vmem:[%s429 + $0x40] sm:$0xff]
        %v2154 = vld [vmem:[%s429 + $0x48] sm:$0xff]
        %v2155 = vld [vmem:[%s429 + $0x50] sm:$0xff]
        %v2156 = vld [vmem:[%s429 + $0x58] sm:$0xff]
        %v2157 = vld [vmem:[%s429 + $0x60] sm:$0xff]
        %v2158 = vld [vmem:[%s429 + $0x68] sm:$0xff]
        %v2159 = vld [vmem:[%s429 + $0x70] sm:$0xff]
        %v2160 = vld [vmem:[%s429 + $0x78] sm:$0xff]
        %v2161 = vld [vmem:[%s429 + $0x80] sm:$0xff]
        %v2162 = vld [vmem:[%s429 + $0x88] sm:$0xff]
        %v2163 = vld [vmem:[%s429 + $0x90] sm:$0xff]
        %v2164 = vld [vmem:[%s429 + $0x98] sm:$0xff]
        %v2165 = vld [vmem:[%s429 + $0xa0] sm:$0xff]
        %v2166 = vld [vmem:[%s429 + $0xa8] sm:$0xff]
        %v2167 = vld [vmem:[%s429 + $0xb0] sm:$0xff]
        %v2168 = vld [vmem:[%s429 + $0xb8] sm:$0xff]
        %v2169 = vld [vmem:[%s429 + $0xc0] sm:$0xff]
        %v2170 = vld [vmem:[%s429 + $0xc8] sm:$0xff]
        %v2171 = vld [vmem:[%s429 + $0xd0] sm:$0xff]
        %v2172 = vld [vmem:[%s429 + $0xd8] sm:$0xff]
        %v2173 = vld [vmem:[%s429 + $0xe0] sm:$0xff]
        %v2174 = vld [vmem:[%s429 + $0xe8] sm:$0xff]
        %v2175 = vld [vmem:[%s429 + $0xf0] sm:$0xff]
        %v2176 = vld [vmem:[%s429 + $0xf8] sm:$0xff]
        %v2177 = vmax.f32 %v2145, %v2010
        %v2178 = vmax.f32 %v2146, %v2013
        %v2179 = vmax.f32 %v2147, %v2016
        %v2180 = vmax.f32 %v2148, %v2019
        %v2181 = vmax.f32 %v2149, %v2022
        %v2182 = vmax.f32 %v2150, %v2025
        %v2183 = vmax.f32 %v2151, %v2028
        %v2184 = vmax.f32 %v2152, %v2031
        %v2185 = vmax.f32 %v2153, %v2034
        %v2186 = vmax.f32 %v2154, %v2037
        %v2187 = vmax.f32 %v2155, %v2040
        %v2188 = vmax.f32 %v2156, %v2043
        %v2189 = vmax.f32 %v2157, %v2046
        %v2190 = vmax.f32 %v2158, %v2049
        %v2191 = vmax.f32 %v2159, %v2052
        %v2192 = vmax.f32 %v2160, %v2055
        %v2193 = vmax.f32 %v2161, %v2058
        %v2194 = vmax.f32 %v2162, %v2061
        %v2195 = vmax.f32 %v2163, %v2064
        %v2196 = vmax.f32 %v2164, %v2067
        %v2197 = vmax.f32 %v2165, %v2070
        %v2198 = vmax.f32 %v2166, %v2073
        %v2199 = vmax.f32 %v2167, %v2076
        %v2200 = vmax.f32 %v2168, %v2079
        %v2201 = vmax.f32 %v2169, %v2082
        %v2202 = vmax.f32 %v2170, %v2085
        %v2203 = vmax.f32 %v2171, %v2088
        %v2204 = vmax.f32 %v2172, %v2091
        %v2205 = vmax.f32 %v2173, %v2094
        %v2206 = vmax.f32 %v2174, %v2097
        %v2207 = vmax.f32 %v2175, %v2100
        %v2208 = vmax.f32 %v2176, %v2103
        %vm2209 = vcmask 7168
        %2210 = vst.msk [vmem:[%s429] sm:$0xff] %vm2209, %v2177
        %2211 = vst.msk [vmem:[%s429 + $0x8] sm:$0xff] %vm2209, %v2178
        %2212 = vst.msk [vmem:[%s429 + $0x10] sm:$0xff] %vm2209, %v2179
        %2213 = vst.msk [vmem:[%s429 + $0x18] sm:$0xff] %vm2209, %v2180
        %2214 = vst.msk [vmem:[%s429 + $0x20] sm:$0xff] %vm2209, %v2181
        %2215 = vst.msk [vmem:[%s429 + $0x28] sm:$0xff] %vm2209, %v2182
        %2216 = vst.msk [vmem:[%s429 + $0x30] sm:$0xff] %vm2209, %v2183
        %2217 = vst.msk [vmem:[%s429 + $0x38] sm:$0xff] %vm2209, %v2184
        %2218 = vst.msk [vmem:[%s429 + $0x40] sm:$0xff] %vm2209, %v2185
        %2219 = vst.msk [vmem:[%s429 + $0x48] sm:$0xff] %vm2209, %v2186
        %2220 = vst.msk [vmem:[%s429 + $0x50] sm:$0xff] %vm2209, %v2187
        %2221 = vst.msk [vmem:[%s429 + $0x58] sm:$0xff] %vm2209, %v2188
        %2222 = vst.msk [vmem:[%s429 + $0x60] sm:$0xff] %vm2209, %v2189
        %2223 = vst.msk [vmem:[%s429 + $0x68] sm:$0xff] %vm2209, %v2190
        %2224 = vst.msk [vmem:[%s429 + $0x70] sm:$0xff] %vm2209, %v2191
        %2225 = vst.msk [vmem:[%s429 + $0x78] sm:$0xff] %vm2209, %v2192
        %2226 = vst.msk [vmem:[%s429 + $0x80] sm:$0xff] %vm2209, %v2193
        %2227 = vst.msk [vmem:[%s429 + $0x88] sm:$0xff] %vm2209, %v2194
        %2228 = vst.msk [vmem:[%s429 + $0x90] sm:$0xff] %vm2209, %v2195
        %2229 = vst.msk [vmem:[%s429 + $0x98] sm:$0xff] %vm2209, %v2196
        %2230 = vst.msk [vmem:[%s429 + $0xa0] sm:$0xff] %vm2209, %v2197
        %2231 = vst.msk [vmem:[%s429 + $0xa8] sm:$0xff] %vm2209, %v2198
        %2232 = vst.msk [vmem:[%s429 + $0xb0] sm:$0xff] %vm2209, %v2199
        %2233 = vst.msk [vmem:[%s429 + $0xb8] sm:$0xff] %vm2209, %v2200
        %2234 = vst.msk [vmem:[%s429 + $0xc0] sm:$0xff] %vm2209, %v2201
        %2235 = vst.msk [vmem:[%s429 + $0xc8] sm:$0xff] %vm2209, %v2202
        %2236 = vst.msk [vmem:[%s429 + $0xd0] sm:$0xff] %vm2209, %v2203
        %2237 = vst.msk [vmem:[%s429 + $0xd8] sm:$0xff] %vm2209, %v2204
        %2238 = vst.msk [vmem:[%s429 + $0xe0] sm:$0xff] %vm2209, %v2205
        %2239 = vst.msk [vmem:[%s429 + $0xe8] sm:$0xff] %vm2209, %v2206
        %2240 = vst.msk [vmem:[%s429 + $0xf0] sm:$0xff] %vm2209, %v2207
        %2241 = vst.msk [vmem:[%s429 + $0xf8] sm:$0xff] %vm2209, %v2208
      $region64: #{tpu_custom_call.1} parent=55 // pred_fallthru
        _
      %s2242 = sadd.s32 %s28, %s29
      %p2243 = scmp.lt.s32.totalorder %s27, 1
      %s2244 = scalar_select %p2243, %s27, 1
      %p2245 = scmp.lt.s32.totalorder %s2242, 0
      %s2246 = scalar_select %p2245, %s2242, 0
      %s2247 = smul.addr %s2244, 32
      %s2248 = sadd.s32 %s2246, %s2247
      %s2249 = smul.addr %s2248, 8
      %s2250 = scalar_lea.vmem %s9, %s2249
      %p2251 = scmp.lt.s32.totalorder %s27, 1
      %s2252 = scalar_select %p2251, %s27, 1
      %p2253 = scmp.lt.s32.totalorder %s28, 0
      %s2254 = scalar_select %p2253, %s28, 0
      %s2255 = smul.addr %s2254, 32
      %s2256 = smul.addr %s2252, 32
      %s2257 = sadd.s32 %s2255, %s2256
      %s2258 = smul.addr %s2257, 8
      %s2259 = scalar_lea.vmem %s10, %s2258
      // Predicated region
      $region65: #{tpu_custom_call.1} parent=55 // pred_check
        %p2260 = pneg %p261
      $region66: #{tpu_custom_call.1} parent=55 // pred_check_branch
        %2262 = sbr.rel (%p2260) target = $region68
      $region67: #{tpu_custom_call.1} parent=55 // pred_region
        %s2263 = sadd.s32 %s28, %s29
      $region68: #{tpu_custom_call.1} parent=55 // pred_fallthru
        _
      // Predicated region
      $region69: #{tpu_custom_call.1} parent=55 // pred_check
        %p2264 = pneg %p289
      $region70: #{tpu_custom_call.1} parent=55 // pred_check_branch
        %2266 = sbr.rel (%p2264) target = $region72
      $region71: #{tpu_custom_call.1} parent=55 // pred_region
        _
      $region72: #{tpu_custom_call.1} parent=55 // pred_fallthru
        _
    $region56: #{tpu_custom_call.1} parent=5 // pred_fallthru
      _
    %p2267 = scmp.le.s32.totalorder 2, %s17
    // Predicated region
    $region73: #{tpu_custom_call.1} parent=5 // pred_check
      %p2268 = pneg %p2267
    $region74: #{tpu_custom_call.1} parent=5 // pred_check_branch
      %2270 = sbr.rel (%p2268) target = $region76
    $region75: #{tpu_custom_call.1} parent=5 // pred_region
      %s2271 = ssub.s32 %s17, 2
      // Predicated region
      $region77: #{tpu_custom_call.1} parent=75 // pred_check
        %p2272 = pneg %p267
      $region78: #{tpu_custom_call.1} parent=75 // pred_check_branch
        %2274 = sbr.rel (%p2272) target = $region80
      $region79: #{tpu_custom_call.1} parent=75 // pred_region
        %s2275 = sadd.s32 %s31, %s32
        %p2276 = scmp.lt.s32.totalorder %s30, 1
        %s2277 = scalar_select %p2276, %s30, 1
        %p2278 = scmp.lt.s32.totalorder %s2275, 0
        %s2279 = scalar_select %p2278, %s2275, 0
        %s2280 = smul.addr %s2277, 32
        %s2281 = sadd.s32 %s2279, %s2280
        %s2282 = smul.addr %s2281, 8
        %s2283 = scalar_lea.vmem %s9, %s2282
      $region80: #{tpu_custom_call.1} parent=75 // pred_fallthru
        _
      // Predicated region
      $region81: #{tpu_custom_call.1} parent=75 // pred_check
        %p2284 = pneg %p295
      $region82: #{tpu_custom_call.1} parent=75 // pred_check_branch
        %2286 = sbr.rel (%p2284) target = $region84
      $region83: #{tpu_custom_call.1} parent=75 // pred_region
        %p2287 = scmp.lt.s32.totalorder %s30, 1
        %s2288 = scalar_select %p2287, %s30, 1
        %p2289 = scmp.lt.s32.totalorder %s31, 0
        %s2290 = scalar_select %p2289, %s31, 0
        %s2291 = smul.addr %s2290, 32
        %s2292 = smul.addr %s2288, 32
        %s2293 = sadd.s32 %s2291, %s2292
        %s2294 = smul.addr %s2293, 8
        %s2295 = scalar_lea.vmem %s10, %s2294
      $region84: #{tpu_custom_call.1} parent=75 // pred_fallthru
        _
    $region76: #{tpu_custom_call.1} parent=5 // pred_fallthru
      _
  $region6: #{tpu_custom_call.1} parent=0 // loop_footer
    %s21 = sadd.s32 1, %s17
  $region7: #{tpu_custom_call.1} parent=0 // loop_footer_branch
    %16 = sbr.rel target = $region3
  $region8: #{tpu_custom_call.1} parent=0 // loop_exit
    _

</llo_original>
